<compile_context>
chip_gen: v7x
topology: tpu7x:2x2x1
jax: 0.10.0
libtpu: 0.0.40
codegen_flags: <defaults>
</compile_context>

<pallas_src>
import functools

import jax
import jax.numpy as jnp
from jax import lax
from jax.experimental import pallas as pl
from jax.experimental.pallas import tpu as pltpu

HIDDEN_SIZE = 32     # H
OUTPUT_SIZE = 64     # V (vocab)
V_PAD = 128          # vocab padded to one full lane width
GATE_PAD = 128       # 3*H = 96 gate lanes, padded to 128


# ----------------------------------------------------------------------------- kernel

def _make_sru_decode_kernel(t_chunk, num_steps, n_chunks, unroll):
    """Build the fused decode kernel for a static (t_chunk, num_steps) config."""
    H = HIDDEN_SIZE
    has_tail = (n_chunks * t_chunk != num_steps)   # padded steps in last chunk

    def kernel(wg_ref, wo_ref, b_ref, h0_ref, c0_ref,
               logp_ref, hT_ref, cT_ref,
               h_scr, c_scr):
        chunk = pl.program_id(1)

        # Load the initial recurrent state into VMEM scratch at the first chunk
        # of each batch block; thereafter h/c stay resident on-chip.
        @pl.when(chunk == 0)
        def _():
            h_scr[...] = h0_ref[...].astype(jnp.float32)
            c_scr[...] = c0_ref[...].astype(jnp.float32)

        # ---- loop-invariant hoists (no CSE of broadcast/iota inside fori) ----
        wg = wg_ref[...]                     # (H, GATE_PAD)  [Wx | Wf | Wr | 0]
        wo = wo_ref[...]                     # (H, V_PAD)
        bg = b_ref[0:1, :]                   # gate biases (0 on Wx lanes)
        bo = b_ref[1:2, :]                   # output bias (padded lanes 0)
        tb = h_scr.shape[0]
        lane = lax.broadcasted_iota(jnp.int32, (tb, V_PAD), 1)
        vocab_mask = lane < OUTPUT_SIZE
        neg_inf = jnp.float32(-1e30)
        t_base = chunk * t_chunk

        def step(i, carry):
            h, c = carry                     # (TB, H) f32 each

            # --- SRU cell: one fused gate matmul on the MXU -------------------
            gates = jnp.dot(h.astype(wg.dtype), wg,
                            preferred_element_type=jnp.float32) + bg
            x_tilde = gates[:, 0:H]
            f = jax.nn.sigmoid(gates[:, H:2 * H])
            r = jax.nn.sigmoid(gates[:, 2 * H:3 * H])
            c_new = f * c + (1.0 - f) * x_tilde
            h_new = r * jnp.tanh(c_new) + (1.0 - r) * h

            # --- output projection + log-softmax (lane-dense, padded vocab) ---
            logits = jnp.dot(h_new.astype(wo.dtype), wo,
                             preferred_element_type=jnp.float32) + bo
            logits = jnp.where(vocab_mask, logits, neg_inf)
            m = jnp.max(logits, axis=-1, keepdims=True)
            lse = jnp.log(jnp.sum(jnp.exp(logits - m), axis=-1, keepdims=True)) + m
            logp_ref[i] = (logits - lse).astype(logp_ref.dtype)

            if has_tail:
                # Padded steps (t >= num_steps) must not advance the recurrence;
                # their logp rows are garbage and sliced off by the wrapper.
                active = (t_base + i) < num_steps
                h_new = jnp.where(active, h_new, h)
                c_new = jnp.where(active, c_new, c)
            return (h_new, c_new)

        h_fin, c_fin = lax.fori_loop(0, t_chunk, step,
                                     (h_scr[...], c_scr[...]),
                                     unroll=unroll)
        h_scr[...] = h_fin
        c_scr[...] = c_fin

        # Write final recurrent state once, at the last chunk of this batch block.
        @pl.when(chunk == pl.num_programs(1) - 1)
        def _():
            hT_ref[...] = h_fin.astype(hT_ref.dtype)
            cT_ref[...] = c_fin.astype(cT_ref.dtype)

    return kernel


# ----------------------------------------------------------------------------- params

def init_params(key, hidden_size=HIDDEN_SIZE, output_size=OUTPUT_SIZE):
    ks = jax.random.split(key, 6)
    scale = 0.1
    return {
        # embedding kept for module parity; it only feeds the dead ReLU branch.
        "embedding": scale * jax.random.normal(ks[0], (output_size, hidden_size), jnp.float32),
        "wx":   scale * jax.random.normal(ks[1], (hidden_size, hidden_size), jnp.float32),
        "wf":   scale * jax.random.normal(ks[2], (hidden_size, hidden_size), jnp.float32),
        "bf":   jnp.zeros((1, hidden_size), jnp.float32),
        "wr":   scale * jax.random.normal(ks[3], (hidden_size, hidden_size), jnp.float32),
        "br":   jnp.zeros((1, hidden_size), jnp.float32),
        "wout": scale * jax.random.normal(ks[4], (hidden_size, output_size), jnp.float32),
        "bout": scale * jax.random.normal(ks[5], (1, output_size), jnp.float32),
    }


def pack_params(params, matmul_dtype=jnp.float32):
    """Fuse + lane-pad weights into the kernel layout.

    matmul_dtype=jnp.bfloat16 halves weight DMA bytes and uses the native bf16
    MXU path (strongly recommended on v5e, native on v6e/v7x). Accumulation and
    all elementwise/EUP math stay f32. Default f32 keeps tight parity with the
    f32 reference."""
    H, V = HIDDEN_SIZE, OUTPUT_SIZE

    w_gates = jnp.zeros((H, GATE_PAD), jnp.float32)
    w_gates = w_gates.at[:, 0:H].set(params["wx"])
    w_gates = w_gates.at[:, H:2 * H].set(params["wf"])
    w_gates = w_gates.at[:, 2 * H:3 * H].set(params["wr"])

    w_out = jnp.zeros((H, V_PAD), jnp.float32).at[:, :V].set(params["wout"])

    b_all = jnp.zeros((2, V_PAD), jnp.float32)
    b_all = b_all.at[0, H:2 * H].set(params["bf"][0])       # no bias on Wx lanes
    b_all = b_all.at[0, 2 * H:3 * H].set(params["br"][0])
    b_all = b_all.at[1, :V].set(params["bout"][0])

    return {
        "w_gates": w_gates.astype(matmul_dtype),
        "w_out":   w_out.astype(matmul_dtype),
        "b_all":   b_all,                                    # biases added in f32
    }


# ----------------------------------------------------------------------------- wrapper

def _default_batch_tile(B):
    """>=2 batch blocks when B permits (megacore on v7x), tile capped at 128 rows."""
    if B <= 8:
        return 8
    half = -(-B // 2)
    return min(((half + 7) // 8) * 8, 128)


def _default_time_chunk(num_steps, tb):
    """Cap the per-chunk logp block at ~4 MiB (safe under every scoped VMEM default)."""
    per_step_bytes = tb * V_PAD * 4
    return max(1, min(num_steps, max(8, (4 * 1024 * 1024) // per_step_bytes)))


def decoder_rnn_sru_decode(hidden, cell, packed, num_steps, *,
                           batch_tile=None, time_chunk=None, trim_outputs=True):
    """Apply the module forward `num_steps` times (autoregressive SRU decode)
    in a single pallas_call, with the time loop fused inside the kernel.

    hidden, cell: (B, H) float32.
    Returns (logp, h_T, c_T). With trim_outputs=True the shapes are
    (num_steps, B, V), (B, H), (B, H); with trim_outputs=False the padded
    (T_pad, B_pad, V_PAD) slab is returned to keep the narrowing slice off the
    hot path."""
    B, H = hidden.shape
    assert H == HIDDEN_SIZE

    tb = batch_tile if batch_tile is not None else _default_batch_tile(B)
    tb = max(8, ((tb + 7) // 8) * 8)
    Bp = pl.cdiv(B, tb) * tb
    if Bp != B:
        pad = ((0, Bp - B), (0, 0))
        hidden = jnp.pad(hidden, pad)
        cell = jnp.pad(cell, pad)
    n_b = Bp // tb

    t_chunk = time_chunk if time_chunk is not None else _default_time_chunk(num_steps, tb)
    t_chunk = max(1, min(t_chunk, num_steps))
    n_chunks = pl.cdiv(num_steps, t_chunk)
    T_pad = n_chunks * t_chunk
    unroll = True if t_chunk <= 8 else 2

    kernel = _make_sru_decode_kernel(t_chunk, num_steps, n_chunks, unroll)

    grid_spec = pltpu.PrefetchScalarGridSpec(
        num_scalar_prefetch=0,
        grid=(n_b, n_chunks),
        in_specs=[
            pl.BlockSpec((HIDDEN_SIZE, GATE_PAD), lambda b, tc: (0, 0)),   # fused gate W
            pl.BlockSpec((HIDDEN_SIZE, V_PAD),    lambda b, tc: (0, 0)),   # padded out W
            pl.BlockSpec((2, V_PAD),              lambda b, tc: (0, 0)),   # packed biases
            pl.BlockSpec((tb, HIDDEN_SIZE),       lambda b, tc: (b, 0)),   # h0
            pl.BlockSpec((tb, HIDDEN_SIZE),       lambda b, tc: (b, 0)),   # c0
        ],
        out_specs=(
            pl.BlockSpec((t_chunk, tb, V_PAD),    lambda b, tc: (tc, b, 0)),  # logp chunk
            pl.BlockSpec((tb, HIDDEN_SIZE),       lambda b, tc: (b, 0)),      # h_T
            pl.BlockSpec((tb, HIDDEN_SIZE),       lambda b, tc: (b, 0)),      # c_T
        ),
        scratch_shapes=[
            pltpu.VMEM((tb, HIDDEN_SIZE), jnp.float32),   # h carry (across chunks)
            pltpu.VMEM((tb, HIDDEN_SIZE), jnp.float32),   # c carry (across chunks)
        ],
    )

    wbytes = (packed["w_gates"].size * packed["w_gates"].dtype.itemsize
              + packed["w_out"].size * packed["w_out"].dtype.itemsize
              + packed["b_all"].size * 4)
    cost = pl.CostEstimate(
        flops=2 * num_steps * Bp * HIDDEN_SIZE * (GATE_PAD + V_PAD),
        transcendentals=num_steps * Bp * (3 * HIDDEN_SIZE + V_PAD + 1),
        bytes_accessed=wbytes + 4 * Bp * HIDDEN_SIZE * 4 + T_pad * Bp * V_PAD * 4,
    )

    logp, hT, cT = pl.pallas_call(
        kernel,
        grid_spec=grid_spec,
        out_shape=(
            jax.ShapeDtypeStruct((T_pad, Bp, V_PAD), jnp.float32),
            jax.ShapeDtypeStruct((Bp, HIDDEN_SIZE), jnp.float32),
            jax.ShapeDtypeStruct((Bp, HIDDEN_SIZE), jnp.float32),
        ),
        compiler_params=pltpu.CompilerParams(
            dimension_semantics=("parallel", "arbitrary")),
        cost_estimate=cost,
    )(packed["w_gates"], packed["w_out"], packed["b_all"],
      hidden.astype(jnp.float32), cell.astype(jnp.float32))

    if trim_outputs:
        return logp[:num_steps, :B, :OUTPUT_SIZE], hT[:B], cT[:B]
    return logp, hT, cT


def decoder_rnn_sru_forward(token_id, hidden, cell, packed):
    """Module-interface parity: hidden/cell (1,1,H) -> (logp (1,V), cell' (1,1,H)).

    `token_id` only feeds the reference's dead embedding+ReLU branch, so it has
    no effect on the outputs and is not read."""
    del token_id
    H = hidden.shape[-1]
    h2d = hidden.reshape(1, H).astype(jnp.float32)
    c2d = cell.reshape(1, H).astype(jnp.float32)
    logp, _h_new, c_new = decoder_rnn_sru_decode(h2d, c2d, packed, num_steps=1)
    return logp[0], c_new.reshape(1, 1, H)


# ----------------------------------------------------------------------------- reference

def _reference_step(h, c, params):
    """Pure-JAX reference for one module forward step (batched)."""
    x = h
    x_tilde = x @ params["wx"]
    f = jax.nn.sigmoid(x @ params["wf"] + params["bf"])
    r = jax.nn.sigmoid(x @ params["wr"] + params["br"])
    c_new = f * c + (1.0 - f) * x_tilde
    h_new = r * jnp.tanh(c_new) + (1.0 - r) * x
    logits = h_new @ params["wout"] + params["bout"]
    logp = jax.nn.log_softmax(logits, axis=1)
    return logp, h_new, c_new


if __name__ == "__main__":
    key = jax.random.PRNGKey(0)
    pkey, hkey, ckey = jax.random.split(key, 3)

    params = init_params(pkey)
    packed = pack_params(params)   # f32; pack_params(..., matmul_dtype=jnp.bfloat16) on v5e/v6e/v7x

    # --- batched, time-fused decode (2 batch blocks, chunked time with a tail) ---
    B, T = 16, 10
    h0 = 0.5 * jax.random.normal(hkey, (B, HIDDEN_SIZE), jnp.float32)
    c0 = 0.5 * jax.random.normal(ckey, (B, HIDDEN_SIZE), jnp.float32)

    logp_seq, hT, cT = decoder_rnn_sru_decode(h0, c0, packed, num_steps=T, time_chunk=4)
    jax.block_until_ready((logp_seq, hT, cT))

    h_ref, c_ref = h0, c0
    ref_logps = []
    for _ in range(T):
        lp, h_ref, c_ref = _reference_step(h_ref, c_ref, params)
        ref_logps.append(lp)
    ref_logp_seq = jnp.stack(ref_logps, axis=0)

    assert logp_seq.shape == (T, B, OUTPUT_SIZE)
    assert jnp.allclose(logp_seq, ref_logp_seq, atol=1e-4, rtol=1e-4)
    assert jnp.allclose(hT, h_ref, atol=1e-4, rtol=1e-4)
    assert jnp.allclose(cT, c_ref, atol=1e-4, rtol=1e-4)

    # --- single-step, module-interface parity -----------------------------------
    token_id = jnp.int32(7)
    hidden = h0[:1].reshape(1, 1, HIDDEN_SIZE)
    cell = c0[:1].reshape(1, 1, HIDDEN_SIZE)
    logp1, cell1 = decoder_rnn_sru_forward(token_id, hidden, cell, packed)
    jax.block_until_ready((logp1, cell1))

    ref_lp1, _, ref_c1 = _reference_step(h0[:1], c0[:1], params)
    assert logp1.shape == (1, OUTPUT_SIZE) and cell1.shape == (1, 1, HIDDEN_SIZE)
    assert jnp.allclose(logp1, ref_lp1, atol=1e-4, rtol=1e-4)
    assert jnp.allclose(cell1, ref_c1.reshape(1, 1, -1), atol=1e-4, rtol=1e-4)

    print("KERNEL_OK")
</pallas_src>

<mosaic_0001>
module attributes {stable_mosaic.version = 11 : i64} {
  func.func @kernel(%arg0: i32, %arg1: i32, %arg2: memref<32x128xf32, #tpu.memory_space<vmem>>, %arg3: memref<32x128xf32, #tpu.memory_space<vmem>>, %arg4: memref<2x128xf32, #tpu.memory_space<vmem>>, %arg5: memref<8x32xf32, #tpu.memory_space<vmem>>, %arg6: memref<8x32xf32, #tpu.memory_space<vmem>>, %arg7: memref<4x8x128xf32, #tpu.memory_space<vmem>>, %arg8: memref<8x32xf32, #tpu.memory_space<vmem>>, %arg9: memref<8x32xf32, #tpu.memory_space<vmem>>, %arg10: memref<8x32xf32, #tpu.memory_space<vmem>>, %arg11: memref<8x32xf32, #tpu.memory_space<vmem>>) attributes {dimension_semantics = [#tpu.dimension_semantics<parallel>, #tpu.dimension_semantics<arbitrary>], iteration_bounds = array<i64: 2, 3>, scalar_prefetch = 0 : i64, scratch_operands = 2 : i64, tpu.core_type = #tpu.core_type<tc>, window_params = [{pipeline_mode = #tpu.pipeline_mode<synchronous>, transform_indices = @transform_0, window_bounds = array<i64: 32, 128>}, {pipeline_mode = #tpu.pipeline_mode<synchronous>, transform_indices = @transform_1, window_bounds = array<i64: 32, 128>}, {pipeline_mode = #tpu.pipeline_mode<synchronous>, transform_indices = @transform_2, window_bounds = array<i64: 2, 128>}, {transform_indices = @transform_3, window_bounds = array<i64: 8, 32>}, {transform_indices = @transform_4, window_bounds = array<i64: 8, 32>}, {transform_indices = @transform_5, window_bounds = array<i64: 4, 8, 128>}, {transform_indices = @transform_6, window_bounds = array<i64: 8, 32>}, {transform_indices = @transform_7, window_bounds = array<i64: 8, 32>}]} {
    %c0_i32 = arith.constant 0 : i32
    %0 = arith.cmpi eq, %arg1, %c0_i32 : i32
    %1 = arith.extui %0 : i1 to i32
    %c0_i32_0 = arith.constant 0 : i32
    %2 = arith.cmpi ne, %1, %c0_i32_0 : i32
    scf.if %2 {
      %c0_62 = arith.constant 0 : index
      %c0_63 = arith.constant 0 : index
      %222 = vector.load %arg5[%c0_62, %c0_63] : memref<8x32xf32, #tpu.memory_space<vmem>>, vector<8x32xf32>
      %c0_64 = arith.constant 0 : index
      %c0_65 = arith.constant 0 : index
      %223 = vector.load %arg10[%c0_64, %c0_65] : memref<8x32xf32, #tpu.memory_space<vmem>>, vector<8x32xf32>
      tpu.vector_store %arg10[%c0_64, %c0_65], %222 {strides = array<i32>} : memref<8x32xf32, #tpu.memory_space<vmem>>, vector<8x32xf32>,
      %c0_66 = arith.constant 0 : index
      %c0_67 = arith.constant 0 : index
      %224 = vector.load %arg6[%c0_66, %c0_67] : memref<8x32xf32, #tpu.memory_space<vmem>>, vector<8x32xf32>
      %c0_68 = arith.constant 0 : index
      %c0_69 = arith.constant 0 : index
      %225 = vector.load %arg11[%c0_68, %c0_69] : memref<8x32xf32, #tpu.memory_space<vmem>>, vector<8x32xf32>
      tpu.vector_store %arg11[%c0_68, %c0_69], %224 {strides = array<i32>} : memref<8x32xf32, #tpu.memory_space<vmem>>, vector<8x32xf32>,
    } else {
    }
    %c0 = arith.constant 0 : index
    %c0_1 = arith.constant 0 : index
    %3 = vector.load %arg2[%c0, %c0_1] : memref<32x128xf32, #tpu.memory_space<vmem>>, vector<32x128xf32>
    %c0_2 = arith.constant 0 : index
    %c0_3 = arith.constant 0 : index
    %4 = vector.load %arg3[%c0_2, %c0_3] : memref<32x128xf32, #tpu.memory_space<vmem>>, vector<32x128xf32>
    %c0_4 = arith.constant 0 : index
    %c0_5 = arith.constant 0 : index
    %5 = vector.load %arg4[%c0_4, %c0_5] : memref<2x128xf32, #tpu.memory_space<vmem>>, vector<1x128xf32>
    %c1 = arith.constant 1 : index
    %c0_6 = arith.constant 0 : index
    %6 = vector.load %arg4[%c1, %c0_6] : memref<2x128xf32, #tpu.memory_space<vmem>>, vector<1x128xf32>
    %7 = tpu.iota {dimensions = array<i32: 1>} : vector<8x128xi32>
    %c64_i32 = arith.constant 64 : i32
    %8 = vector.broadcast %c64_i32 : i32 to vector<8x128xi32>
    %9 = arith.cmpi slt, %7, %8 : vector<8x128xi32>
    %c4_i32 = arith.constant 4 : i32
    %10 = arith.muli %arg1, %c4_i32 : i32
    %c0_7 = arith.constant 0 : index
    %c0_8 = arith.constant 0 : index
    %11 = vector.load %arg10[%c0_7, %c0_8] : memref<8x32xf32, #tpu.memory_space<vmem>>, vector<8x32xf32>
    %c0_9 = arith.constant 0 : index
    %c0_10 = arith.constant 0 : index
    %12 = vector.load %arg11[%c0_9, %c0_10] : memref<8x32xf32, #tpu.memory_space<vmem>>, vector<8x32xf32>
    %cst = arith.constant -1.000000e+30 : f32
    %c0_i32_11 = arith.constant 0 : i32
    %cst_12 = arith.constant dense<0.000000e+00> : vector<8x128xf32>
    %13 = tpu.matmul %11, %3, %cst_12 {dimension_numbers = #tpu.dot_dimension_numbers<[1], [0], [0], [1], [0, 0, 1, 1], [], []>} : vector<8x32xf32>, vector<32x128xf32>, vector<8x128xf32> -> vector<8x128xf32>
    %14 = vector.broadcast %5 : vector<1x128xf32> to vector<8x128xf32>
    %15 = arith.addf %13, %14 : vector<8x128xf32>
    %16 = vector.extract_strided_slice %15 {offsets = [0, 0], sizes = [8, 32], strides = [1, 1]} : vector<8x128xf32> to vector<8x32xf32>
    %17 = vector.extract_strided_slice %15 {offsets = [0, 32], sizes = [8, 32], strides = [1, 1]} : vector<8x128xf32> to vector<8x32xf32>
    %18 = arith.negf %17 : vector<8x32xf32>
    %19 = math.exp %18 : vector<8x32xf32>
    %cst_13 = arith.constant 1.000000e+00 : f32
    %20 = vector.broadcast %cst_13 : f32 to vector<8x32xf32>
    %21 = arith.addf %20, %19 : vector<8x32xf32>
    %22 = arith.divf %20, %21 : vector<8x32xf32>
    %23 = vector.extract_strided_slice %15 {offsets = [0, 64], sizes = [8, 32], strides = [1, 1]} : vector<8x128xf32> to vector<8x32xf32>
    %24 = arith.negf %23 : vector<8x32xf32>
    %25 = math.exp %24 : vector<8x32xf32>
    %cst_14 = arith.constant 1.000000e+00 : f32
    %26 = vector.broadcast %cst_14 : f32 to vector<8x32xf32>
    %27 = arith.addf %26, %25 : vector<8x32xf32>
    %28 = arith.divf %26, %27 : vector<8x32xf32>
    %29 = arith.mulf %22, %12 : vector<8x32xf32>
    %cst_15 = arith.constant 1.000000e+00 : f32
    %30 = vector.broadcast %cst_15 : f32 to vector<8x32xf32>
    %31 = arith.subf %30, %22 : vector<8x32xf32>
    %32 = arith.mulf %31, %16 : vector<8x32xf32>
    %33 = arith.addf %29, %32 : vector<8x32xf32>
    %34 = math.tanh %33 : vector<8x32xf32>
    %35 = arith.mulf %28, %34 : vector<8x32xf32>
    %cst_16 = arith.constant 1.000000e+00 : f32
    %36 = vector.broadcast %cst_16 : f32 to vector<8x32xf32>
    %37 = arith.subf %36, %28 : vector<8x32xf32>
    %38 = arith.mulf %37, %11 : vector<8x32xf32>
    %39 = arith.addf %35, %38 : vector<8x32xf32>
    %cst_17 = arith.constant dense<0.000000e+00> : vector<8x128xf32>
    %40 = tpu.matmul %39, %4, %cst_17 {dimension_numbers = #tpu.dot_dimension_numbers<[1], [0], [0], [1], [0, 0, 1, 1], [], []>} : vector<8x32xf32>, vector<32x128xf32>, vector<8x128xf32> -> vector<8x128xf32>
    %41 = vector.broadcast %6 : vector<1x128xf32> to vector<8x128xf32>
    %42 = arith.addf %40, %41 : vector<8x128xf32>
    %43 = vector.broadcast %cst : f32 to vector<8x128xf32>
    %44 = arith.select %9, %42, %43 : vector<8x128xi1>, vector<8x128xf32>
    %cst_18 = arith.constant dense<0xFF800000> : vector<8xf32>
    %45 = vector.multi_reduction <maximumf>, %44, %cst_18 [1] : vector<8x128xf32> to vector<8xf32>
    %46 = vector.shape_cast %45 : vector<8xf32> to vector<8x1xf32>
    %47 = vector.broadcast %46 : vector<8x1xf32> to vector<8x128xf32>
    %48 = arith.subf %44, %47 : vector<8x128xf32>
    %49 = math.exp %48 : vector<8x128xf32>
    %cst_19 = arith.constant dense<0.000000e+00> : vector<8xf32>
    %50 = vector.multi_reduction <add>, %49, %cst_19 [1] : vector<8x128xf32> to vector<8xf32>
    %51 = vector.shape_cast %50 : vector<8xf32> to vector<8x1xf32>
    %52 = math.log %51 : vector<8x1xf32>
    %53 = arith.addf %52, %46 : vector<8x1xf32>
    %54 = vector.broadcast %53 : vector<8x1xf32> to vector<8x128xf32>
    %55 = arith.subf %44, %54 : vector<8x128xf32>
    %56 = arith.index_cast %c0_i32_11 : i32 to index
    %c0_20 = arith.constant 0 : index
    %c0_21 = arith.constant 0 : index
    %57 = vector.load %arg7[%56, %c0_20, %c0_21] : memref<4x8x128xf32, #tpu.memory_space<vmem>>, vector<1x8x128xf32>
    %58 = vector.shape_cast %57 : vector<1x8x128xf32> to vector<8x128xf32>
    %59 = vector.shape_cast %55 : vector<8x128xf32> to vector<1x8x128xf32>
    tpu.vector_store %arg7[%56, %c0_20, %c0_21], %59 {strides = array<i32>} : memref<4x8x128xf32, #tpu.memory_space<vmem>>, vector<1x8x128xf32>,
    %60 = arith.addi %10, %c0_i32_11 : i32
    %c10_i32 = arith.constant 10 : i32
    %61 = arith.cmpi slt, %60, %c10_i32 : i32
    %62 = arith.select %61, %39, %11 : vector<8x32xf32>
    %63 = arith.select %61, %33, %12 : vector<8x32xf32>
    %c1_i32 = arith.constant 1 : i32
    %cst_22 = arith.constant dense<0.000000e+00> : vector<8x128xf32>
    %64 = tpu.matmul %62, %3, %cst_22 {dimension_numbers = #tpu.dot_dimension_numbers<[1], [0], [0], [1], [0, 0, 1, 1], [], []>} : vector<8x32xf32>, vector<32x128xf32>, vector<8x128xf32> -> vector<8x128xf32>
    %65 = vector.broadcast %5 : vector<1x128xf32> to vector<8x128xf32>
    %66 = arith.addf %64, %65 : vector<8x128xf32>
    %67 = vector.extract_strided_slice %66 {offsets = [0, 0], sizes = [8, 32], strides = [1, 1]} : vector<8x128xf32> to vector<8x32xf32>
    %68 = vector.extract_strided_slice %66 {offsets = [0, 32], sizes = [8, 32], strides = [1, 1]} : vector<8x128xf32> to vector<8x32xf32>
    %69 = arith.negf %68 : vector<8x32xf32>
    %70 = math.exp %69 : vector<8x32xf32>
    %cst_23 = arith.constant 1.000000e+00 : f32
    %71 = vector.broadcast %cst_23 : f32 to vector<8x32xf32>
    %72 = arith.addf %71, %70 : vector<8x32xf32>
    %73 = arith.divf %71, %72 : vector<8x32xf32>
    %74 = vector.extract_strided_slice %66 {offsets = [0, 64], sizes = [8, 32], strides = [1, 1]} : vector<8x128xf32> to vector<8x32xf32>
    %75 = arith.negf %74 : vector<8x32xf32>
    %76 = math.exp %75 : vector<8x32xf32>
    %cst_24 = arith.constant 1.000000e+00 : f32
    %77 = vector.broadcast %cst_24 : f32 to vector<8x32xf32>
    %78 = arith.addf %77, %76 : vector<8x32xf32>
    %79 = arith.divf %77, %78 : vector<8x32xf32>
    %80 = arith.mulf %73, %63 : vector<8x32xf32>
    %cst_25 = arith.constant 1.000000e+00 : f32
    %81 = vector.broadcast %cst_25 : f32 to vector<8x32xf32>
    %82 = arith.subf %81, %73 : vector<8x32xf32>
    %83 = arith.mulf %82, %67 : vector<8x32xf32>
    %84 = arith.addf %80, %83 : vector<8x32xf32>
    %85 = math.tanh %84 : vector<8x32xf32>
    %86 = arith.mulf %79, %85 : vector<8x32xf32>
    %cst_26 = arith.constant 1.000000e+00 : f32
    %87 = vector.broadcast %cst_26 : f32 to vector<8x32xf32>
    %88 = arith.subf %87, %79 : vector<8x32xf32>
    %89 = arith.mulf %88, %62 : vector<8x32xf32>
    %90 = arith.addf %86, %89 : vector<8x32xf32>
    %cst_27 = arith.constant dense<0.000000e+00> : vector<8x128xf32>
    %91 = tpu.matmul %90, %4, %cst_27 {dimension_numbers = #tpu.dot_dimension_numbers<[1], [0], [0], [1], [0, 0, 1, 1], [], []>} : vector<8x32xf32>, vector<32x128xf32>, vector<8x128xf32> -> vector<8x128xf32>
    %92 = vector.broadcast %6 : vector<1x128xf32> to vector<8x128xf32>
    %93 = arith.addf %91, %92 : vector<8x128xf32>
    %94 = vector.broadcast %cst : f32 to vector<8x128xf32>
    %95 = arith.select %9, %93, %94 : vector<8x128xi1>, vector<8x128xf32>
    %cst_28 = arith.constant dense<0xFF800000> : vector<8xf32>
    %96 = vector.multi_reduction <maximumf>, %95, %cst_28 [1] : vector<8x128xf32> to vector<8xf32>
    %97 = vector.shape_cast %96 : vector<8xf32> to vector<8x1xf32>
    %98 = vector.broadcast %97 : vector<8x1xf32> to vector<8x128xf32>
    %99 = arith.subf %95, %98 : vector<8x128xf32>
    %100 = math.exp %99 : vector<8x128xf32>
    %cst_29 = arith.constant dense<0.000000e+00> : vector<8xf32>
    %101 = vector.multi_reduction <add>, %100, %cst_29 [1] : vector<8x128xf32> to vector<8xf32>
    %102 = vector.shape_cast %101 : vector<8xf32> to vector<8x1xf32>
    %103 = math.log %102 : vector<8x1xf32>
    %104 = arith.addf %103, %97 : vector<8x1xf32>
    %105 = vector.broadcast %104 : vector<8x1xf32> to vector<8x128xf32>
    %106 = arith.subf %95, %105 : vector<8x128xf32>
    %107 = arith.index_cast %c1_i32 : i32 to index
    %c0_30 = arith.constant 0 : index
    %c0_31 = arith.constant 0 : index
    %108 = vector.load %arg7[%107, %c0_30, %c0_31] : memref<4x8x128xf32, #tpu.memory_space<vmem>>, vector<1x8x128xf32>
    %109 = vector.shape_cast %108 : vector<1x8x128xf32> to vector<8x128xf32>
    %110 = vector.shape_cast %106 : vector<8x128xf32> to vector<1x8x128xf32>
    tpu.vector_store %arg7[%107, %c0_30, %c0_31], %110 {strides = array<i32>} : memref<4x8x128xf32, #tpu.memory_space<vmem>>, vector<1x8x128xf32>,
    %111 = arith.addi %10, %c1_i32 : i32
    %c10_i32_32 = arith.constant 10 : i32
    %112 = arith.cmpi slt, %111, %c10_i32_32 : i32
    %113 = arith.select %112, %90, %62 : vector<8x32xf32>
    %114 = arith.select %112, %84, %63 : vector<8x32xf32>
    %c2_i32 = arith.constant 2 : i32
    %cst_33 = arith.constant dense<0.000000e+00> : vector<8x128xf32>
    %115 = tpu.matmul %113, %3, %cst_33 {dimension_numbers = #tpu.dot_dimension_numbers<[1], [0], [0], [1], [0, 0, 1, 1], [], []>} : vector<8x32xf32>, vector<32x128xf32>, vector<8x128xf32> -> vector<8x128xf32>
    %116 = vector.broadcast %5 : vector<1x128xf32> to vector<8x128xf32>
    %117 = arith.addf %115, %116 : vector<8x128xf32>
    %118 = vector.extract_strided_slice %117 {offsets = [0, 0], sizes = [8, 32], strides = [1, 1]} : vector<8x128xf32> to vector<8x32xf32>
    %119 = vector.extract_strided_slice %117 {offsets = [0, 32], sizes = [8, 32], strides = [1, 1]} : vector<8x128xf32> to vector<8x32xf32>
    %120 = arith.negf %119 : vector<8x32xf32>
    %121 = math.exp %120 : vector<8x32xf32>
    %cst_34 = arith.constant 1.000000e+00 : f32
    %122 = vector.broadcast %cst_34 : f32 to vector<8x32xf32>
    %123 = arith.addf %122, %121 : vector<8x32xf32>
    %124 = arith.divf %122, %123 : vector<8x32xf32>
    %125 = vector.extract_strided_slice %117 {offsets = [0, 64], sizes = [8, 32], strides = [1, 1]} : vector<8x128xf32> to vector<8x32xf32>
    %126 = arith.negf %125 : vector<8x32xf32>
    %127 = math.exp %126 : vector<8x32xf32>
    %cst_35 = arith.constant 1.000000e+00 : f32
    %128 = vector.broadcast %cst_35 : f32 to vector<8x32xf32>
    %129 = arith.addf %128, %127 : vector<8x32xf32>
    %130 = arith.divf %128, %129 : vector<8x32xf32>
    %131 = arith.mulf %124, %114 : vector<8x32xf32>
    %cst_36 = arith.constant 1.000000e+00 : f32
    %132 = vector.broadcast %cst_36 : f32 to vector<8x32xf32>
    %133 = arith.subf %132, %124 : vector<8x32xf32>
    %134 = arith.mulf %133, %118 : vector<8x32xf32>
    %135 = arith.addf %131, %134 : vector<8x32xf32>
    %136 = math.tanh %135 : vector<8x32xf32>
    %137 = arith.mulf %130, %136 : vector<8x32xf32>
    %cst_37 = arith.constant 1.000000e+00 : f32
    %138 = vector.broadcast %cst_37 : f32 to vector<8x32xf32>
    %139 = arith.subf %138, %130 : vector<8x32xf32>
    %140 = arith.mulf %139, %113 : vector<8x32xf32>
    %141 = arith.addf %137, %140 : vector<8x32xf32>
    %cst_38 = arith.constant dense<0.000000e+00> : vector<8x128xf32>
    %142 = tpu.matmul %141, %4, %cst_38 {dimension_numbers = #tpu.dot_dimension_numbers<[1], [0], [0], [1], [0, 0, 1, 1], [], []>} : vector<8x32xf32>, vector<32x128xf32>, vector<8x128xf32> -> vector<8x128xf32>
    %143 = vector.broadcast %6 : vector<1x128xf32> to vector<8x128xf32>
    %144 = arith.addf %142, %143 : vector<8x128xf32>
    %145 = vector.broadcast %cst : f32 to vector<8x128xf32>
    %146 = arith.select %9, %144, %145 : vector<8x128xi1>, vector<8x128xf32>
    %cst_39 = arith.constant dense<0xFF800000> : vector<8xf32>
    %147 = vector.multi_reduction <maximumf>, %146, %cst_39 [1] : vector<8x128xf32> to vector<8xf32>
    %148 = vector.shape_cast %147 : vector<8xf32> to vector<8x1xf32>
    %149 = vector.broadcast %148 : vector<8x1xf32> to vector<8x128xf32>
    %150 = arith.subf %146, %149 : vector<8x128xf32>
    %151 = math.exp %150 : vector<8x128xf32>
    %cst_40 = arith.constant dense<0.000000e+00> : vector<8xf32>
    %152 = vector.multi_reduction <add>, %151, %cst_40 [1] : vector<8x128xf32> to vector<8xf32>
    %153 = vector.shape_cast %152 : vector<8xf32> to vector<8x1xf32>
    %154 = math.log %153 : vector<8x1xf32>
    %155 = arith.addf %154, %148 : vector<8x1xf32>
    %156 = vector.broadcast %155 : vector<8x1xf32> to vector<8x128xf32>
    %157 = arith.subf %146, %156 : vector<8x128xf32>
    %158 = arith.index_cast %c2_i32 : i32 to index
    %c0_41 = arith.constant 0 : index
    %c0_42 = arith.constant 0 : index
    %159 = vector.load %arg7[%158, %c0_41, %c0_42] : memref<4x8x128xf32, #tpu.memory_space<vmem>>, vector<1x8x128xf32>
    %160 = vector.shape_cast %159 : vector<1x8x128xf32> to vector<8x128xf32>
    %161 = vector.shape_cast %157 : vector<8x128xf32> to vector<1x8x128xf32>
    tpu.vector_store %arg7[%158, %c0_41, %c0_42], %161 {strides = array<i32>} : memref<4x8x128xf32, #tpu.memory_space<vmem>>, vector<1x8x128xf32>,
    %162 = arith.addi %10, %c2_i32 : i32
    %c10_i32_43 = arith.constant 10 : i32
    %163 = arith.cmpi slt, %162, %c10_i32_43 : i32
    %164 = arith.select %163, %141, %113 : vector<8x32xf32>
    %165 = arith.select %163, %135, %114 : vector<8x32xf32>
    %c3_i32 = arith.constant 3 : i32
    %cst_44 = arith.constant dense<0.000000e+00> : vector<8x128xf32>
    %166 = tpu.matmul %164, %3, %cst_44 {dimension_numbers = #tpu.dot_dimension_numbers<[1], [0], [0], [1], [0, 0, 1, 1], [], []>} : vector<8x32xf32>, vector<32x128xf32>, vector<8x128xf32> -> vector<8x128xf32>
    %167 = vector.broadcast %5 : vector<1x128xf32> to vector<8x128xf32>
    %168 = arith.addf %166, %167 : vector<8x128xf32>
    %169 = vector.extract_strided_slice %168 {offsets = [0, 0], sizes = [8, 32], strides = [1, 1]} : vector<8x128xf32> to vector<8x32xf32>
    %170 = vector.extract_strided_slice %168 {offsets = [0, 32], sizes = [8, 32], strides = [1, 1]} : vector<8x128xf32> to vector<8x32xf32>
    %171 = arith.negf %170 : vector<8x32xf32>
    %172 = math.exp %171 : vector<8x32xf32>
    %cst_45 = arith.constant 1.000000e+00 : f32
    %173 = vector.broadcast %cst_45 : f32 to vector<8x32xf32>
    %174 = arith.addf %173, %172 : vector<8x32xf32>
    %175 = arith.divf %173, %174 : vector<8x32xf32>
    %176 = vector.extract_strided_slice %168 {offsets = [0, 64], sizes = [8, 32], strides = [1, 1]} : vector<8x128xf32> to vector<8x32xf32>
    %177 = arith.negf %176 : vector<8x32xf32>
    %178 = math.exp %177 : vector<8x32xf32>
    %cst_46 = arith.constant 1.000000e+00 : f32
    %179 = vector.broadcast %cst_46 : f32 to vector<8x32xf32>
    %180 = arith.addf %179, %178 : vector<8x32xf32>
    %181 = arith.divf %179, %180 : vector<8x32xf32>
    %182 = arith.mulf %175, %165 : vector<8x32xf32>
    %cst_47 = arith.constant 1.000000e+00 : f32
    %183 = vector.broadcast %cst_47 : f32 to vector<8x32xf32>
    %184 = arith.subf %183, %175 : vector<8x32xf32>
    %185 = arith.mulf %184, %169 : vector<8x32xf32>
    %186 = arith.addf %182, %185 : vector<8x32xf32>
    %187 = math.tanh %186 : vector<8x32xf32>
    %188 = arith.mulf %181, %187 : vector<8x32xf32>
    %cst_48 = arith.constant 1.000000e+00 : f32
    %189 = vector.broadcast %cst_48 : f32 to vector<8x32xf32>
    %190 = arith.subf %189, %181 : vector<8x32xf32>
    %191 = arith.mulf %190, %164 : vector<8x32xf32>
    %192 = arith.addf %188, %191 : vector<8x32xf32>
    %cst_49 = arith.constant dense<0.000000e+00> : vector<8x128xf32>
    %193 = tpu.matmul %192, %4, %cst_49 {dimension_numbers = #tpu.dot_dimension_numbers<[1], [0], [0], [1], [0, 0, 1, 1], [], []>} : vector<8x32xf32>, vector<32x128xf32>, vector<8x128xf32> -> vector<8x128xf32>
    %194 = vector.broadcast %6 : vector<1x128xf32> to vector<8x128xf32>
    %195 = arith.addf %193, %194 : vector<8x128xf32>
    %196 = vector.broadcast %cst : f32 to vector<8x128xf32>
    %197 = arith.select %9, %195, %196 : vector<8x128xi1>, vector<8x128xf32>
    %cst_50 = arith.constant dense<0xFF800000> : vector<8xf32>
    %198 = vector.multi_reduction <maximumf>, %197, %cst_50 [1] : vector<8x128xf32> to vector<8xf32>
    %199 = vector.shape_cast %198 : vector<8xf32> to vector<8x1xf32>
    %200 = vector.broadcast %199 : vector<8x1xf32> to vector<8x128xf32>
    %201 = arith.subf %197, %200 : vector<8x128xf32>
    %202 = math.exp %201 : vector<8x128xf32>
    %cst_51 = arith.constant dense<0.000000e+00> : vector<8xf32>
    %203 = vector.multi_reduction <add>, %202, %cst_51 [1] : vector<8x128xf32> to vector<8xf32>
    %204 = vector.shape_cast %203 : vector<8xf32> to vector<8x1xf32>
    %205 = math.log %204 : vector<8x1xf32>
    %206 = arith.addf %205, %199 : vector<8x1xf32>
    %207 = vector.broadcast %206 : vector<8x1xf32> to vector<8x128xf32>
    %208 = arith.subf %197, %207 : vector<8x128xf32>
    %209 = arith.index_cast %c3_i32 : i32 to index
    %c0_52 = arith.constant 0 : index
    %c0_53 = arith.constant 0 : index
    %210 = vector.load %arg7[%209, %c0_52, %c0_53] : memref<4x8x128xf32, #tpu.memory_space<vmem>>, vector<1x8x128xf32>
    %211 = vector.shape_cast %210 : vector<1x8x128xf32> to vector<8x128xf32>
    %212 = vector.shape_cast %208 : vector<8x128xf32> to vector<1x8x128xf32>
    tpu.vector_store %arg7[%209, %c0_52, %c0_53], %212 {strides = array<i32>} : memref<4x8x128xf32, #tpu.memory_space<vmem>>, vector<1x8x128xf32>,
    %213 = arith.addi %10, %c3_i32 : i32
    %c10_i32_54 = arith.constant 10 : i32
    %214 = arith.cmpi slt, %213, %c10_i32_54 : i32
    %215 = arith.select %214, %192, %164 : vector<8x32xf32>
    %216 = arith.select %214, %186, %165 : vector<8x32xf32>
    %c4_i32_55 = arith.constant 4 : i32
    %c0_56 = arith.constant 0 : index
    %c0_57 = arith.constant 0 : index
    %217 = vector.load %arg10[%c0_56, %c0_57] : memref<8x32xf32, #tpu.memory_space<vmem>>, vector<8x32xf32>
    tpu.vector_store %arg10[%c0_56, %c0_57], %215 {strides = array<i32>} : memref<8x32xf32, #tpu.memory_space<vmem>>, vector<8x32xf32>,
    %c0_58 = arith.constant 0 : index
    %c0_59 = arith.constant 0 : index
    %218 = vector.load %arg11[%c0_58, %c0_59] : memref<8x32xf32, #tpu.memory_space<vmem>>, vector<8x32xf32>
    tpu.vector_store %arg11[%c0_58, %c0_59], %216 {strides = array<i32>} : memref<8x32xf32, #tpu.memory_space<vmem>>, vector<8x32xf32>,
    %c2_i32_60 = arith.constant 2 : i32
    %219 = arith.cmpi eq, %arg1, %c2_i32_60 : i32
    %220 = arith.extui %219 : i1 to i32
    %c0_i32_61 = arith.constant 0 : i32
    %221 = arith.cmpi ne, %220, %c0_i32_61 : i32
    scf.if %221 {
      %c0_62 = arith.constant 0 : index
      %c0_63 = arith.constant 0 : index
      %222 = vector.load %arg8[%c0_62, %c0_63] : memref<8x32xf32, #tpu.memory_space<vmem>>, vector<8x32xf32>
      tpu.vector_store %arg8[%c0_62, %c0_63], %215 {strides = array<i32>} : memref<8x32xf32, #tpu.memory_space<vmem>>, vector<8x32xf32>,
      %c0_64 = arith.constant 0 : index
      %c0_65 = arith.constant 0 : index
      %223 = vector.load %arg9[%c0_64, %c0_65] : memref<8x32xf32, #tpu.memory_space<vmem>>, vector<8x32xf32>
      tpu.vector_store %arg9[%c0_64, %c0_65], %216 {strides = array<i32>} : memref<8x32xf32, #tpu.memory_space<vmem>>, vector<8x32xf32>,
    } else {
    }
    return
  }
  func.func @transform_0(%arg0: i32, %arg1: i32) -> (i32, i32) {
    %c0_i32 = arith.constant 0 : i32
    %c0_i32_0 = arith.constant 0 : i32
    %c0_i32_1 = arith.constant 0 : i32
    return %c0_i32, %c0_i32_0 : i32, i32
  }
  func.func @transform_1(%arg0: i32, %arg1: i32) -> (i32, i32) {
    %c0_i32 = arith.constant 0 : i32
    %c0_i32_0 = arith.constant 0 : i32
    %c0_i32_1 = arith.constant 0 : i32
    return %c0_i32, %c0_i32_0 : i32, i32
  }
  func.func @transform_2(%arg0: i32, %arg1: i32) -> (i32, i32) {
    %c0_i32 = arith.constant 0 : i32
    %c0_i32_0 = arith.constant 0 : i32
    %c0_i32_1 = arith.constant 0 : i32
    return %c0_i32, %c0_i32_0 : i32, i32
  }
  func.func @transform_3(%arg0: i32, %arg1: i32) -> (i32, i32) {
    %c0_i32 = arith.constant 0 : i32
    %c0_i32_0 = arith.constant 0 : i32
    return %arg0, %c0_i32 : i32, i32
  }
  func.func @transform_4(%arg0: i32, %arg1: i32) -> (i32, i32) {
    %c0_i32 = arith.constant 0 : i32
    %c0_i32_0 = arith.constant 0 : i32
    return %arg0, %c0_i32 : i32, i32
  }
  func.func @transform_5(%arg0: i32, %arg1: i32) -> (i32, i32, i32) {
    %c0_i32 = arith.constant 0 : i32
    %c0_i32_0 = arith.constant 0 : i32
    return %arg1, %arg0, %c0_i32 : i32, i32, i32
  }
  func.func @transform_6(%arg0: i32, %arg1: i32) -> (i32, i32) {
    %c0_i32 = arith.constant 0 : i32
    %c0_i32_0 = arith.constant 0 : i32
    return %arg0, %c0_i32 : i32, i32
  }
  func.func @transform_7(%arg0: i32, %arg1: i32) -> (i32, i32) {
    %c0_i32 = arith.constant 0 : i32
    %c0_i32_0 = arith.constant 0 : i32
    return %arg0, %c0_i32 : i32, i32
  }
}

</mosaic_0001>

<llo_original>
// kernel: tpu_custom_call.1
$region0: #{tpu_custom_call.1}
  #allocation0 [shape = 'u32[]', space=smem, size = 0x4, offset = 0x4, fixed_abs, tag = 'smem constant byte address 0x4 - core index']
  #allocation1 [shape = 'u32[144,128]{1,0:T(1,128)}', space=vmem, size = 0x12000, scoped, tag = 'internal scratch']
  #allocation2 [shape = 'f32[8,32]{1,0:T(8,128)}', space=vmem, size = 0x1000, scoped, tag = 'scratch operand']
  #allocation3 [shape = 'f32[8,32]{1,0:T(8,128)}', space=vmem, size = 0x1000, scoped, tag = 'scratch operand']
  %s0 = inlined_call_operand.hbm [shape: f32[32,128], index: 0, kind: input, shape index: {}]
  %s1 = inlined_call_operand.hbm [shape: f32[32,128], index: 1, kind: input, shape index: {}]
  %s2 = inlined_call_operand.vmem [shape: f32[2,128], index: 2, kind: input, shape index: {}]
  %s3 = inlined_call_operand.hbm [shape: f32[16,32], index: 3, kind: input, shape index: {}]
  %s4 = inlined_call_operand.hbm [shape: f32[16,32], index: 4, kind: input, shape index: {}]
  %s5 = inlined_call_operand.hbm [shape: f32[12,16,128], index: 5, kind: output, shape index: {0}]
  %s6 = inlined_call_operand.hbm [shape: f32[16,32], index: 6, kind: output, shape index: {1}]
  %s7 = inlined_call_operand.hbm [shape: f32[16,32], index: 7, kind: output, shape index: {2}]
  %8 = xla_tuple %s5, %s6, %s7
  %s9 = sld [smem:[#allocation0]]
  $region93: #{tpu_custom_call.1} parent=0
    _
  %s11 = ssub.s32 1, %s9
  %s12 = scalar_select 0, %s11, %s9
  $region1: #{tpu_custom_call.1} parent=0
    #allocation4 [shape = 'u8[16384]{0}', space=vmem, size = 0x4000, scoped, tag = 'input window, operand 0, single buffered']
    #allocation5 [shape = 's32[2]{0}', space=sflag, size = 0x8, scoped, tag = 'scoped memory for tpu_custom_call.1']
    #allocation6 [shape = 's32[2]{0}', space=sflag, size = 0x8, scoped, tag = 'scoped memory for tpu_custom_call.1']
    #allocation7 [shape = 'u8[16384]{0}', space=vmem, size = 0x4000, scoped, tag = 'input window, operand 1, single buffered']
    #allocation8 [shape = 's32[1]{0}', space=sflag, size = 0x4, scoped, tag = 'scoped memory for tpu_custom_call.1']
    #allocation9 [shape = 'u8[8192]{0}', space=vmem, size = 0x2000, scoped, tag = 'input window, operand 3']
    #allocation10 [shape = 'u8[8192]{0}', space=vmem, size = 0x2000, scoped, tag = 'input window, operand 4']
    #allocation11 [shape = 'u8[32768]{0}', space=vmem, size = 0x8000, scoped, tag = 'output window, operand 0']
    #allocation12 [shape = 'u8[8192]{0}', space=vmem, size = 0x2000, scoped, tag = 'output window, operand 1']
    #allocation13 [shape = 's32[2]{0}', space=sflag, size = 0x8, scoped, tag = 'scoped memory for tpu_custom_call.1']
    #allocation14 [shape = 'u8[8192]{0}', space=vmem, size = 0x2000, scoped, tag = 'output window, operand 2']
    %13 = vsyncpa [#allocation5], 0
    %14 = vsyncpa [#allocation8], 0
    %15 = vsyncpa [#allocation6], 0
    %s16 = scalar_lea.sflag [#allocation6], 1
    %17 = vsyncpa %s16, 0
    %18 = vsyncpa [#allocation13], 0
    %s19 = scalar_lea.sflag [#allocation13], 1
    %20 = vsyncpa %s19, 0
    loop: start=0, step=1, limit=8
    $region2: #{tpu_custom_call.1} parent=1 // loop_pre_header
      _
    $region3: #{tpu_custom_call.1} parent=1 // loop_header
      %s22 = sphi 0, %s26
      %p23 = scmp.ge.s32.totalorder %s22, 8
      %s29 = sphi 0, %s41
      %s30 = sphi 0, %s37
      %s31 = sphi 0, %s29
      %s32 = sphi 0, %s30
      %s33 = sphi 0, %s31
      %s34 = sphi 0, %s32
      %s42 = sphi 0, %s42
      %s44 = sphi 0, %s42
      %s45 = sphi 0, %s44
      %s59 = sphi 0, %s45
      %s63 = sphi 0, %s63
      %s65 = sphi 0, %s63
      %s66 = sphi 0, %s65
      %s80 = sphi 0, %s66
      %s84 = sphi 0, %s84
      %s86 = sphi 0, %s84
      %s87 = sphi 0, %s86
      %s101 = sphi 0, %s87
      %s107 = sphi 0, %s109
      %s110 = sphi 0, %s107
      %s111 = sphi 0, %s110
      %s127 = sphi 0, %s111
      %s133 = sphi 0, %s135
      %s136 = sphi 0, %s133
      %s137 = sphi 0, %s136
      %s153 = sphi 0, %s137
      %s161 = sphi 0, %s163
      %s164 = sphi 0, %s161
      %s165 = sphi 0, %s164
      %s181 = sphi 0, %s165
      %s187 = sphi 0, %s189
      %s190 = sphi 0, %s187
      %s191 = sphi 0, %s190
      %s207 = sphi 0, %s191
      %s213 = sphi 0, %s215
      %s216 = sphi 0, %s213
      %s217 = sphi 0, %s216
      %s233 = sphi 0, %s217
    $region4: #{tpu_custom_call.1} parent=1 // loop_header_branch
      %25 = sbr.rel (%p23) target = $region8
    $region5: #{tpu_custom_call.1} parent=1 // loop_body
      %s27 = ssub.s32 %s22, 1
      %s28 = ssub.s32 %s22, 2
      %s35 = sadd.s32 1, %s30
      %p36 = scmp.ge.s32.totalorder %s35, 3
      %s37 = scalar_select %p36, 0, %s35
      %s38 = sadd.s32 1, %s29
      %s39 = scalar_select %p36, %s38, %s29
      %p40 = scmp.ge.s32.totalorder %s39, 2
      %s41 = scalar_select %p40, 0, %s39
      %s43 = sadd.s32 %s42, 1
      %p46 = scmp.eq.s32.totalorder %s22, 5
      %p47 = scmp.ne.s32.totalorder %s42, %s44
      %p48 = scmp.eq.s32.totalorder %s22, 0
      %p49 = por %p47, %p48
      %p50 = scmp.ne.s32.totalorder %s42, %s44
      %p51 = scmp.eq.s32.totalorder %s27, 5
      %p52 = por %p50, %p51
      %p53 = scmp.ne.s32.totalorder %s44, %s45
      %p54 = scmp.eq.s32.totalorder %s27, 0
      %p55 = por %p53, %p54
      %p56 = scmp.ne.s32.totalorder %s44, %s45
      %p57 = scmp.eq.s32.totalorder %s28, 5
      %p58 = por %p56, %p57
      %p60 = scmp.ne.s32.totalorder %s45, %s59
      %p61 = scmp.eq.s32.totalorder %s28, 0
      %p62 = por %p60, %p61
      %s64 = sadd.s32 %s63, 1
      %p67 = scmp.eq.s32.totalorder %s22, 5
      %p68 = scmp.ne.s32.totalorder %s63, %s65
      %p69 = scmp.eq.s32.totalorder %s22, 0
      %p70 = por %p68, %p69
      %p71 = scmp.ne.s32.totalorder %s63, %s65
      %p72 = scmp.eq.s32.totalorder %s27, 5
      %p73 = por %p71, %p72
      %p74 = scmp.ne.s32.totalorder %s65, %s66
      %p75 = scmp.eq.s32.totalorder %s27, 0
      %p76 = por %p74, %p75
      %p77 = scmp.ne.s32.totalorder %s65, %s66
      %p78 = scmp.eq.s32.totalorder %s28, 5
      %p79 = por %p77, %p78
      %p81 = scmp.ne.s32.totalorder %s66, %s80
      %p82 = scmp.eq.s32.totalorder %s28, 0
      %p83 = por %p81, %p82
      %s85 = sadd.s32 %s84, 1
      %p88 = scmp.eq.s32.totalorder %s22, 5
      %p89 = scmp.ne.s32.totalorder %s84, %s86
      %p90 = scmp.eq.s32.totalorder %s22, 0
      %p91 = por %p89, %p90
      %p92 = scmp.ne.s32.totalorder %s84, %s86
      %p93 = scmp.eq.s32.totalorder %s27, 5
      %p94 = por %p92, %p93
      %p95 = scmp.ne.s32.totalorder %s86, %s87
      %p96 = scmp.eq.s32.totalorder %s27, 0
      %p97 = por %p95, %p96
      %p98 = scmp.ne.s32.totalorder %s86, %s87
      %p99 = scmp.eq.s32.totalorder %s28, 5
      %p100 = por %p98, %p99
      %p102 = scmp.ne.s32.totalorder %s87, %s101
      %p103 = scmp.eq.s32.totalorder %s28, 0
      %p104 = por %p102, %p103
      %s105 = ssub.s32 %s29, %s41
      %p106 = scmp.eq.s32.totalorder %s105, 0
      %s108 = sadd.s32 %s107, 1
      %s109 = scalar_select %p106, %s107, %s108
      %p112 = pneg %p106
      %p113 = scmp.eq.s32.totalorder %s22, 5
      %p114 = por %p112, %p113
      %p115 = scmp.ne.s32.totalorder %s107, %s110
      %p116 = scmp.eq.s32.totalorder %s22, 0
      %p117 = por %p115, %p116
      %p118 = scmp.ne.s32.totalorder %s107, %s110
      %p119 = scmp.eq.s32.totalorder %s27, 5
      %p120 = por %p118, %p119
      %p121 = scmp.ne.s32.totalorder %s110, %s111
      %p122 = scmp.eq.s32.totalorder %s27, 0
      %p123 = por %p121, %p122
      %p124 = scmp.ne.s32.totalorder %s110, %s111
      %p125 = scmp.eq.s32.totalorder %s28, 5
      %p126 = por %p124, %p125
      %p128 = scmp.ne.s32.totalorder %s111, %s127
      %p129 = scmp.eq.s32.totalorder %s28, 0
      %p130 = por %p128, %p129
      %s131 = ssub.s32 %s29, %s41
      %p132 = scmp.eq.s32.totalorder %s131, 0
      %s134 = sadd.s32 %s133, 1
      %s135 = scalar_select %p132, %s133, %s134
      %p138 = pneg %p132
      %p139 = scmp.eq.s32.totalorder %s22, 5
      %p140 = por %p138, %p139
      %p141 = scmp.ne.s32.totalorder %s133, %s136
      %p142 = scmp.eq.s32.totalorder %s22, 0
      %p143 = por %p141, %p142
      %p144 = scmp.ne.s32.totalorder %s133, %s136
      %p145 = scmp.eq.s32.totalorder %s27, 5
      %p146 = por %p144, %p145
      %p147 = scmp.ne.s32.totalorder %s136, %s137
      %p148 = scmp.eq.s32.totalorder %s27, 0
      %p149 = por %p147, %p148
      %p150 = scmp.ne.s32.totalorder %s136, %s137
      %p151 = scmp.eq.s32.totalorder %s28, 5
      %p152 = por %p150, %p151
      %p154 = scmp.ne.s32.totalorder %s137, %s153
      %p155 = scmp.eq.s32.totalorder %s28, 0
      %p156 = por %p154, %p155
      %s157 = ssub.s32 %s30, %s37
      %s158 = ssub.s32 %s29, %s41
      %s159 = sor.u32 %s157, %s158
      %p160 = scmp.eq.s32.totalorder %s159, 0
      %s162 = sadd.s32 %s161, 1
      %s163 = scalar_select %p160, %s161, %s162
      %p166 = pneg %p160
      %p167 = scmp.eq.s32.totalorder %s22, 5
      %p168 = por %p166, %p167
      %p169 = scmp.ne.s32.totalorder %s161, %s164
      %p170 = scmp.eq.s32.totalorder %s22, 0
      %p171 = por %p169, %p170
      %p172 = scmp.ne.s32.totalorder %s161, %s164
      %p173 = scmp.eq.s32.totalorder %s27, 5
      %p174 = por %p172, %p173
      %p175 = scmp.ne.s32.totalorder %s164, %s165
      %p176 = scmp.eq.s32.totalorder %s27, 0
      %p177 = por %p175, %p176
      %p178 = scmp.ne.s32.totalorder %s164, %s165
      %p179 = scmp.eq.s32.totalorder %s28, 5
      %p180 = por %p178, %p179
      %p182 = scmp.ne.s32.totalorder %s165, %s181
      %p183 = scmp.eq.s32.totalorder %s28, 0
      %p184 = por %p182, %p183
      %s185 = ssub.s32 %s29, %s41
      %p186 = scmp.eq.s32.totalorder %s185, 0
      %s188 = sadd.s32 %s187, 1
      %s189 = scalar_select %p186, %s187, %s188
      %p192 = pneg %p186
      %p193 = scmp.eq.s32.totalorder %s22, 5
      %p194 = por %p192, %p193
      %p195 = scmp.ne.s32.totalorder %s187, %s190
      %p196 = scmp.eq.s32.totalorder %s22, 0
      %p197 = por %p195, %p196
      %p198 = scmp.ne.s32.totalorder %s187, %s190
      %p199 = scmp.eq.s32.totalorder %s27, 5
      %p200 = por %p198, %p199
      %p201 = scmp.ne.s32.totalorder %s190, %s191
      %p202 = scmp.eq.s32.totalorder %s27, 0
      %p203 = por %p201, %p202
      %p204 = scmp.ne.s32.totalorder %s190, %s191
      %p205 = scmp.eq.s32.totalorder %s28, 5
      %p206 = por %p204, %p205
      %p208 = scmp.ne.s32.totalorder %s191, %s207
      %p209 = scmp.eq.s32.totalorder %s28, 0
      %p210 = por %p208, %p209
      %s211 = ssub.s32 %s29, %s41
      %p212 = scmp.eq.s32.totalorder %s211, 0
      %s214 = sadd.s32 %s213, 1
      %s215 = scalar_select %p212, %s213, %s214
      %p218 = pneg %p212
      %p219 = scmp.eq.s32.totalorder %s22, 5
      %p220 = por %p218, %p219
      %p221 = scmp.ne.s32.totalorder %s213, %s216
      %p222 = scmp.eq.s32.totalorder %s22, 0
      %p223 = por %p221, %p222
      %p224 = scmp.ne.s32.totalorder %s213, %s216
      %p225 = scmp.eq.s32.totalorder %s27, 5
      %p226 = por %p224, %p225
      %p227 = scmp.ne.s32.totalorder %s216, %s217
      %p228 = scmp.eq.s32.totalorder %s27, 0
      %p229 = por %p227, %p228
      %p230 = scmp.ne.s32.totalorder %s216, %s217
      %p231 = scmp.eq.s32.totalorder %s28, 5
      %p232 = por %p230, %p231
      %p234 = scmp.ne.s32.totalorder %s217, %s233
      %p235 = scmp.eq.s32.totalorder %s28, 0
      %p236 = por %p234, %p235
      %p237 = scmp.le.s32.totalorder 1, %s22
      %p238 = scmp.lt.s32.totalorder %s22, 7
      %p239 = pnand %p237, %p238
      %p240 = pneg %p239
      // Predicated region
      $region9: #{tpu_custom_call.1} parent=5 // pred_check
        _
      $region10: #{tpu_custom_call.1} parent=5 // pred_check_branch
        %242 = sbr.rel (%p239) target = $region12
      $region11: #{tpu_custom_call.1} parent=5 // pred_region
        %s243 = ssub.s32 %s22, 1
        // Predicated region
        $region13: #{tpu_custom_call.1} parent=11 // pred_check
          %p244 = pneg %p55
        $region14: #{tpu_custom_call.1} parent=11 // pred_check_branch
          %246 = sbr.rel (%p244) target = $region16
        $region15: #{tpu_custom_call.1} parent=11 // pred_region
          %s248 = ssub.s32 512, 512
          %249 = vsyncadd [#allocation5], %s248
          %s250 = sshll.u32 [#allocation4], 4
          %s251 = int_to_ptr.vmem [resolvable:$true] %s250
          %256 = dma.hbm_to_vmem [thread:$0]  %s0, 512, %s251, [#allocation5], 128, 128, 8
        $region16: #{tpu_custom_call.1} parent=11 // pred_fallthru
          _
        // Predicated region
        $region17: #{tpu_custom_call.1} parent=11 // pred_check
          %p257 = pneg %p76
        $region18: #{tpu_custom_call.1} parent=11 // pred_check_branch
          %259 = sbr.rel (%p257) target = $region20
        $region19: #{tpu_custom_call.1} parent=11 // pred_region
          %s261 = ssub.s32 512, 512
          %262 = vsyncadd [#allocation8], %s261
          %s263 = sshll.u32 [#allocation7], 4
          %s264 = int_to_ptr.vmem [resolvable:$true] %s263
          %269 = dma.hbm_to_vmem [thread:$0]  %s1, 512, %s264, [#allocation8], 128, 128, 8
        $region20: #{tpu_custom_call.1} parent=11 // pred_fallthru
          _
        // Predicated region
        $region21: #{tpu_custom_call.1} parent=11 // pred_check
          %p270 = pneg %p97
        $region22: #{tpu_custom_call.1} parent=11 // pred_check_branch
          %272 = sbr.rel (%p270) target = $region24
        $region23: #{tpu_custom_call.1} parent=11 // pred_region
          _
        $region24: #{tpu_custom_call.1} parent=11 // pred_fallthru
          _
      $region12: #{tpu_custom_call.1} parent=5 // pred_fallthru
        _
      %p273 = scmp.lt.s32.totalorder %s22, 6
      // Predicated region
      $region25: #{tpu_custom_call.1} parent=5 // pred_check
        %p274 = pneg %p273
      $region26: #{tpu_custom_call.1} parent=5 // pred_check_branch
        %276 = sbr.rel (%p274) target = $region28
      $region27: #{tpu_custom_call.1} parent=5 // pred_region
        // Predicated region
        $region29: #{tpu_custom_call.1} parent=27 // pred_check
          %p277 = pneg %p117
        $region30: #{tpu_custom_call.1} parent=27 // pred_check_branch
          %279 = sbr.rel (%p277) target = $region32
        $region31: #{tpu_custom_call.1} parent=27 // pred_region
          %s280 = sand.u32 %s22, 1
          %s281 = scalar_lea.sflag [#allocation5], %s280
          %s282 = sand.u32 %s107, 1
          %s283 = smul.addr %s282, 8
          %s284 = scalar_lea.vmem [#allocation9], %s283
          %s286 = ssub.s32 128, 128
          %287 = vsyncadd %s281, %s286
          %s288 = smul.addr %s29, 128
          %s289 = scalar_lea.hbm %s3, %s288
          %s291 = sshll.u32 %s284, 4
          %s292 = int_to_ptr.vmem [resolvable:$true] %s291
          %294 = dma.hbm_to_vmem [thread:$0]  %s289, 128, %s292, %s281
        $region32: #{tpu_custom_call.1} parent=27 // pred_fallthru
          _
        // Predicated region
        $region33: #{tpu_custom_call.1} parent=27 // pred_check
          %p295 = pneg %p143
        $region34: #{tpu_custom_call.1} parent=27 // pred_check_branch
          %297 = sbr.rel (%p295) target = $region36
        $region35: #{tpu_custom_call.1} parent=27 // pred_region
          %s298 = sand.u32 %s22, 1
          %s299 = scalar_lea.sflag [#allocation5], %s298
          %s300 = sand.u32 %s133, 1
          %s301 = smul.addr %s300, 8
          %s302 = scalar_lea.vmem [#allocation10], %s301
          %s304 = ssub.s32 128, 128
          %305 = vsyncadd %s299, %s304
          %s306 = smul.addr %s29, 128
          %s307 = scalar_lea.hbm %s4, %s306
          %s309 = sshll.u32 %s302, 4
          %s310 = int_to_ptr.vmem [resolvable:$true] %s309
          %312 = dma.hbm_to_vmem [thread:$0]  %s307, 128, %s310, %s299
        $region36: #{tpu_custom_call.1} parent=27 // pred_fallthru
          _
      $region28: #{tpu_custom_call.1} parent=5 // pred_fallthru
        _
      %p313 = scmp.le.s32.totalorder 1, %s22
      %p314 = scmp.lt.s32.totalorder %s22, 7
      %p315 = pnand %p313, %p314
      %p316 = pneg %p315
      // Predicated region
      $region37: #{tpu_custom_call.1} parent=5 // pred_check
        _
      $region38: #{tpu_custom_call.1} parent=5 // pred_check_branch
        %318 = sbr.rel (%p315) target = $region40
      $region39: #{tpu_custom_call.1} parent=5 // pred_region
        %s319 = ssub.s32 %s22, 1
        // Predicated region
        $region41: #{tpu_custom_call.1} parent=39 // pred_check
          %p320 = pneg %p55
        $region42: #{tpu_custom_call.1} parent=39 // pred_check_branch
          %322 = sbr.rel (%p320) target = $region44
        $region43: #{tpu_custom_call.1} parent=39 // pred_region
          %323 = dma.done [#allocation5], 512
        $region44: #{tpu_custom_call.1} parent=39 // pred_fallthru
          _
        // Predicated region
        $region45: #{tpu_custom_call.1} parent=39 // pred_check
          %p324 = pneg %p76
        $region46: #{tpu_custom_call.1} parent=39 // pred_check_branch
          %326 = sbr.rel (%p324) target = $region48
        $region47: #{tpu_custom_call.1} parent=39 // pred_region
          %327 = dma.done [#allocation8], 512
        $region48: #{tpu_custom_call.1} parent=39 // pred_fallthru
          _
        %s328 = sand.u32 %s27, 1
        %s329 = scalar_lea.sflag [#allocation5], %s328
        %s330 = sand.u32 %s110, 1
        %s331 = smul.addr %s330, 8
        %s332 = scalar_lea.vmem [#allocation9], %s331
        // Predicated region
        $region49: #{tpu_custom_call.1} parent=39 // pred_check
          %p333 = pneg %p123
        $region50: #{tpu_custom_call.1} parent=39 // pred_check_branch
          %335 = sbr.rel (%p333) target = $region52
        $region51: #{tpu_custom_call.1} parent=39 // pred_region
          %336 = dma.done %s329, 128
        $region52: #{tpu_custom_call.1} parent=39 // pred_fallthru
          _
        %s337 = sand.u32 %s27, 1
        %s338 = scalar_lea.sflag [#allocation5], %s337
        %s339 = sand.u32 %s136, 1
        %s340 = smul.addr %s339, 8
        %s341 = scalar_lea.vmem [#allocation10], %s340
        // Predicated region
        $region53: #{tpu_custom_call.1} parent=39 // pred_check
          %p342 = pneg %p149
        $region54: #{tpu_custom_call.1} parent=39 // pred_check_branch
          %344 = sbr.rel (%p342) target = $region56
        $region55: #{tpu_custom_call.1} parent=39 // pred_region
          %345 = dma.done %s338, 128
        $region56: #{tpu_custom_call.1} parent=39 // pred_fallthru
          _
        %p346 = pneg %p55
        %p347 = pneg %p52
        %p348 = pneg %p76
        %p349 = pneg %p73
        %p350 = pneg %p97
        %p351 = pneg %p94
        %s352 = sand.u32 %s27, 1
        %s353 = scalar_lea.sflag [#allocation5], %s352
        %s354 = sand.u32 %s110, 1
        %s355 = smul.addr %s354, 8
        %s356 = scalar_lea.vmem [#allocation9], %s355
        %p357 = pneg %p123
        %p358 = pneg %p120
        %s359 = sand.u32 %s27, 1
        %s360 = scalar_lea.sflag [#allocation5], %s359
        %s361 = sand.u32 %s136, 1
        %s362 = smul.addr %s361, 8
        %s363 = scalar_lea.vmem [#allocation10], %s362
        %p364 = pneg %p149
        %p365 = pneg %p146
        %p366 = pneg %p177
        %p367 = pneg %p174
        %s368 = sand.u32 %s164, 1
        %s369 = scalar_lea.sflag [#allocation6], %s368
        %s370 = sand.u32 %s164, 1
        %s371 = smul.addr %s370, 32
        %s372 = scalar_lea.vmem [#allocation11], %s371
        %p373 = pneg %p203
        %p374 = pneg %p200
        %s375 = sand.u32 %s27, 1
        %s376 = scalar_lea.sflag [#allocation13], %s375
        %s377 = sand.u32 %s190, 1
        %s378 = smul.addr %s377, 8
        %s379 = scalar_lea.vmem [#allocation12], %s378
        %p380 = pneg %p229
        %p381 = pneg %p226
        %s382 = sand.u32 %s27, 1
        %s383 = scalar_lea.sflag [#allocation13], %s382
        %s384 = sand.u32 %s216, 1
        %s385 = smul.addr %s384, 8
        %s386 = scalar_lea.vmem [#allocation14], %s385
        %s387 = smul.u32 4, %s32
        %p388 = scmp.eq.s32.totalorder %s32, 0
        // Predicated region
        $region57: #{tpu_custom_call.1} parent=39 // pred_check
          %p389 = pneg %p388
        $region58: #{tpu_custom_call.1} parent=39 // pred_check_branch
          %391 = sbr.rel (%p389) target = $region60
        $region59: #{tpu_custom_call.1} parent=39 // pred_region
          %v392 = vld [vmem:[%s332] sm:$0xff]
          %vm393 = vcmask 261120
          %394 = vst.msk [vmem:[#allocation2] sm:$0xff] %vm393, %v392
          %v395 = vld [vmem:[%s341] sm:$0xff]
          %396 = vst.msk [vmem:[#allocation3] sm:$0xff] %vm393, %v395
        $region60: #{tpu_custom_call.1} parent=39 // pred_fallthru
          _
        %v397 = vld [vmem:[#allocation4] sm:$0xff]
        %v398 = vld [vmem:[#allocation4 + $0x8] sm:$0xff]
        %v399 = vld [vmem:[#allocation4 + $0x10] sm:$0xff]
        %v400 = vld [vmem:[#allocation4 + $0x18] sm:$0xff]
        %v401 = vld [vmem:[#allocation7] sm:$0xff]
        %v402 = vld [vmem:[#allocation7 + $0x8] sm:$0xff]
        %v403 = vld [vmem:[#allocation7 + $0x10] sm:$0xff]
        %v404 = vld [vmem:[#allocation7 + $0x18] sm:$0xff]
        %v405 = vld [vmem:[%s2] sm:$0x1]
        %v406 = vld [vmem:[%s2 + $0x1] sm:$0x1]
        %v407 = vlaneseq
        %v408 = vand.u32 %v407, 127
        %vm409 = vcmp.lt.s32.totalorder %v408, 64
        %s410 = smul.u32 %s32, 4
        %v411 = vld [vmem:[#allocation2] sm:$0xff]
        %v412 = vld [vmem:[#allocation3] sm:$0xff]
        %v413 = vlaneseq
        %v414 = vshrl.u32 %v413, 7
        %v415 = vsub.s32 0, %v414
        %v416 = vrot.slane %v405, %v415
        %vm417 = vcmask 261120
        %v419 = vsel %vm417, %v411, 0
        %421 = vmatprep.subr.mxu0 0.0
        %422 = vmatpush1.msra.mxu0 %v397
        %423 = vmatprep.subr.mxu0 0.0
        %424 = vmatpush1.msra.mxu0 %v398
        %425 = vmatprep.subr.mxu0 0.0
        %426 = vmatpush1.msra.mxu0 %v399
        %427 = vmatprep.subr.mxu0 0.0
        %428 = vmatpush1.msra.mxu0 %v400
        %429 = vmatprep.subr.mxu0 0.0
        %430 = vmatpush1.msra.mxu0 0.0
        %431 = vmatprep.subr.mxu0 0.0
        %432 = vmatpush1.msra.mxu0 0.0
        %433 = vmatprep.subr.mxu0 0.0
        %434 = vmatpush1.msra.mxu0 0.0
        %435 = vmatprep.subr.mxu0 0.0
        %436 = vmatpush1.msra.mxu0 0.0
        %437 = vmatprep.subr.mxu0 0.0
        %438 = vmatpush1.msra.mxu0 0.0
        %439 = vmatprep.subr.mxu0 0.0
        %440 = vmatpush1.msra.mxu0 0.0
        %441 = vmatprep.subr.mxu0 0.0
        %442 = vmatpush1.msra.mxu0 0.0
        %443 = vmatprep.subr.mxu0 0.0
        %444 = vmatpush1.msra.mxu0 0.0
        %445 = vmatprep.subr.mxu0 0.0
        %446 = vmatpush1.msra.mxu0 0.0
        %447 = vmatprep.subr.mxu0 0.0
        %448 = vmatpush1.msra.mxu0 0.0
        %449 = vmatprep.subr.mxu0 0.0
        %450 = vmatpush1.msra.mxu0 0.0
        %451 = vmatprep.subr.mxu0 0.0
        %452 = vmatpush1.msra.mxu0 0.0
        %453 = vmatprep.subr.mxu0 0.0
        %454 = vmatpush1.msra.mxu0 0.0
        %455 = vmatprep.subr.mxu0 0.0
        %456 = vmatpush1.msra.mxu0 0.0
        %457 = vmatprep.subr.mxu0 0.0
        %458 = vmatpush1.msra.mxu0 0.0
        %459 = vmatprep.subr.mxu0 0.0
        %460 = vmatpush1.msra.mxu0 0.0
        %461 = vmatprep.subr.mxu0 0.0
        %462 = vmatpush1.msra.mxu0 0.0
        %463 = vmatprep.subr.mxu0 0.0
        %464 = vmatpush1.msra.mxu0 0.0
        %465 = vmatprep.subr.mxu0 0.0
        %466 = vmatpush1.msra.mxu0 0.0
        %467 = vmatprep.subr.mxu0 0.0
        %468 = vmatpush1.msra.mxu0 0.0
        %469 = vmatprep.subr.mxu0 0.0
        %470 = vmatpush1.msra.mxu0 0.0
        %471 = vmatprep.subr.mxu0 0.0
        %472 = vmatpush1.msra.mxu0 0.0
        %473 = vmatprep.subr.mxu0 0.0
        %474 = vmatpush1.msra.mxu0 0.0
        %475 = vmatprep.subr.mxu0 0.0
        %476 = vmatpush1.msra.mxu0 0.0
        %477 = vmatprep.subr.mxu0 0.0
        %478 = vmatpush1.msra.mxu0 0.0
        %479 = vmatprep.subr.mxu0 0.0
        %480 = vmatpush1.msra.mxu0 0.0
        %481 = vmatprep.subr.mxu0 0.0
        %482 = vmatpush1.msra.mxu0 0.0
        %483 = vmatprep.subr.mxu0 0.0
        %484 = vmatpush1.msra.mxu0 0.0
        %485 = vmatprep.mubr.f32.mxu0 0.0
        %486 = vmatmul.mubr.f32.gmra.mrb[0].mxu0 %v419
        %v487 = vpop.f32.mrb[0].mxu0
        %v488 = vadd.f32 %v416, %v487
        %v489 = vpop.f32.mrb[0].mxu0
        %490 = vdwg.mxu0
        %v491 = vxor.u32 %v488, 2147483648
        %v492 = vmul.f32 %v491, 1.442695
        %v493 = vpow.pop %v492
        %v494 = vadd.f32 %v493, 1.0
        %v495 = vrcp.pop %v494
        %v496 = vmul.f32 1.0, %v495
        %498 = vrot.lane.b32.xlu0 %v412, 32
        %v499 = vpop.permute.xlu0 %498
        %v501 = vmul.f32 %v496, %v499
        %v502 = vsub.f32 1.0, %v496
        %504 = vrot.lane.b32.xlu0 %v488, 32
        %v505 = vpop.permute.xlu0 %504
        %v507 = vmul.f32 %v502, %v505
        %v508 = vadd.f32 %v501, %v507
        %v509 = vtanh.pop %v508
        %511 = vrot.lane.b32.xlu0 %v509, 32
        %v512 = vpop.permute.xlu0 %511
        %v514 = vmul.f32 %v496, %v512
        %515 = vrot.lane.b32.xlu0 %v411, 64
        %v516 = vpop.permute.xlu0 %515
        %v518 = vmul.f32 %v502, %v516
        %v519 = vadd.f32 %v514, %v518
        %v520 = vlaneseq
        %v521 = vshrl.u32 %v520, 7
        %v522 = vsub.s32 0, %v521
        %v523 = vrot.slane %v406, %v522
        %525 = vrot.lane.b32.xlu0 %v519, 64
        %v526 = vpop.permute.xlu0 %525
        %v527 = vsel %vm417, %v526, 0
        %529 = vmatprep.subr.mxu0 0.0
        %530 = vmatpush1.msra.mxu0 %v401
        %531 = vmatprep.subr.mxu0 0.0
        %532 = vmatpush1.msra.mxu0 %v402
        %533 = vmatprep.subr.mxu0 0.0
        %534 = vmatpush1.msra.mxu0 %v403
        %535 = vmatprep.subr.mxu0 0.0
        %536 = vmatpush1.msra.mxu0 %v404
        %537 = vmatprep.subr.mxu0 0.0
        %538 = vmatpush1.msra.mxu0 0.0
        %539 = vmatprep.subr.mxu0 0.0
        %540 = vmatpush1.msra.mxu0 0.0
        %541 = vmatprep.subr.mxu0 0.0
        %542 = vmatpush1.msra.mxu0 0.0
        %543 = vmatprep.subr.mxu0 0.0
        %544 = vmatpush1.msra.mxu0 0.0
        %545 = vmatprep.subr.mxu0 0.0
        %546 = vmatpush1.msra.mxu0 0.0
        %547 = vmatprep.subr.mxu0 0.0
        %548 = vmatpush1.msra.mxu0 0.0
        %549 = vmatprep.subr.mxu0 0.0
        %550 = vmatpush1.msra.mxu0 0.0
        %551 = vmatprep.subr.mxu0 0.0
        %552 = vmatpush1.msra.mxu0 0.0
        %553 = vmatprep.subr.mxu0 0.0
        %554 = vmatpush1.msra.mxu0 0.0
        %555 = vmatprep.subr.mxu0 0.0
        %556 = vmatpush1.msra.mxu0 0.0
        %557 = vmatprep.subr.mxu0 0.0
        %558 = vmatpush1.msra.mxu0 0.0
        %559 = vmatprep.subr.mxu0 0.0
        %560 = vmatpush1.msra.mxu0 0.0
        %561 = vmatprep.subr.mxu0 0.0
        %562 = vmatpush1.msra.mxu0 0.0
        %563 = vmatprep.subr.mxu0 0.0
        %564 = vmatpush1.msra.mxu0 0.0
        %565 = vmatprep.subr.mxu0 0.0
        %566 = vmatpush1.msra.mxu0 0.0
        %567 = vmatprep.subr.mxu0 0.0
        %568 = vmatpush1.msra.mxu0 0.0
        %569 = vmatprep.subr.mxu0 0.0
        %570 = vmatpush1.msra.mxu0 0.0
        %571 = vmatprep.subr.mxu0 0.0
        %572 = vmatpush1.msra.mxu0 0.0
        %573 = vmatprep.subr.mxu0 0.0
        %574 = vmatpush1.msra.mxu0 0.0
        %575 = vmatprep.subr.mxu0 0.0
        %576 = vmatpush1.msra.mxu0 0.0
        %577 = vmatprep.subr.mxu0 0.0
        %578 = vmatpush1.msra.mxu0 0.0
        %579 = vmatprep.subr.mxu0 0.0
        %580 = vmatpush1.msra.mxu0 0.0
        %581 = vmatprep.subr.mxu0 0.0
        %582 = vmatpush1.msra.mxu0 0.0
        %583 = vmatprep.subr.mxu0 0.0
        %584 = vmatpush1.msra.mxu0 0.0
        %585 = vmatprep.subr.mxu0 0.0
        %586 = vmatpush1.msra.mxu0 0.0
        %587 = vmatprep.subr.mxu0 0.0
        %588 = vmatpush1.msra.mxu0 0.0
        %589 = vmatprep.subr.mxu0 0.0
        %590 = vmatpush1.msra.mxu0 0.0
        %591 = vmatprep.subr.mxu0 0.0
        %592 = vmatpush1.msra.mxu0 0.0
        %593 = vmatprep.mubr.f32.mxu0 0.0
        %594 = vmatmul.mubr.f32.gmra.mrb[0].mxu0 %v527
        %v595 = vpop.f32.mrb[0].mxu0
        %v596 = vadd.f32 %v523, %v595
        %v597 = vpop.f32.mrb[0].mxu0
        %598 = vdwg.mxu0
        %v599 = vsel %vm409, %v596, -1e+30
        %600 = vmax.xlane.f32.xlu0 %v599
        %v601 = vpop.xlane.xlu0 %600
        %v602 = vsub.f32 %v599, %v601
        %v603 = vmul.f32 %v602, 1.442695
        %v604 = vpow.pop %v603
        %605 = vadd.xlane.f32.xlu0 %v604
        %v606 = vpop.xlane.xlu0 %605
        %v607 = vlog2.pop %v606
        %v608 = vmul.f32 %v607, 0.6931472
        %v609 = vadd.f32 %v608, %v601
        %v610 = vsub.f32 %v599, %v609
        %611 = vst [vmem:[%s372] sm:$0xff] %v610
        %p612 = scmp.lt.s32.totalorder %s410, 10
        %s613 = scalar_select %p612, 1, 0
        %v614 = vstv %s613
        %vm615 = vcmp.eq.s32.totalorder %v614, 1
        %v616 = vsel %vm615, %v519, %v516
        %v617 = vsel %vm615, %v508, %v499
        %619 = vrot.lane.b32.xlu0 %v616, 64
        %v620 = vpop.permute.xlu0 %619
        %v621 = vsel %vm417, %v620, 0
        %623 = vmatprep.subr.mxu0 0.0
        %624 = vmatpush1.msra.mxu0 %v397
        %625 = vmatprep.subr.mxu0 0.0
        %626 = vmatpush1.msra.mxu0 %v398
        %627 = vmatprep.subr.mxu0 0.0
        %628 = vmatpush1.msra.mxu0 %v399
        %629 = vmatprep.subr.mxu0 0.0
        %630 = vmatpush1.msra.mxu0 %v400
        %631 = vmatprep.subr.mxu0 0.0
        %632 = vmatpush1.msra.mxu0 0.0
        %633 = vmatprep.subr.mxu0 0.0
        %634 = vmatpush1.msra.mxu0 0.0
        %635 = vmatprep.subr.mxu0 0.0
        %636 = vmatpush1.msra.mxu0 0.0
        %637 = vmatprep.subr.mxu0 0.0
        %638 = vmatpush1.msra.mxu0 0.0
        %639 = vmatprep.subr.mxu0 0.0
        %640 = vmatpush1.msra.mxu0 0.0
        %641 = vmatprep.subr.mxu0 0.0
        %642 = vmatpush1.msra.mxu0 0.0
        %643 = vmatprep.subr.mxu0 0.0
        %644 = vmatpush1.msra.mxu0 0.0
        %645 = vmatprep.subr.mxu0 0.0
        %646 = vmatpush1.msra.mxu0 0.0
        %647 = vmatprep.subr.mxu0 0.0
        %648 = vmatpush1.msra.mxu0 0.0
        %649 = vmatprep.subr.mxu0 0.0
        %650 = vmatpush1.msra.mxu0 0.0
        %651 = vmatprep.subr.mxu0 0.0
        %652 = vmatpush1.msra.mxu0 0.0
        %653 = vmatprep.subr.mxu0 0.0
        %654 = vmatpush1.msra.mxu0 0.0
        %655 = vmatprep.subr.mxu0 0.0
        %656 = vmatpush1.msra.mxu0 0.0
        %657 = vmatprep.subr.mxu0 0.0
        %658 = vmatpush1.msra.mxu0 0.0
        %659 = vmatprep.subr.mxu0 0.0
        %660 = vmatpush1.msra.mxu0 0.0
        %661 = vmatprep.subr.mxu0 0.0
        %662 = vmatpush1.msra.mxu0 0.0
        %663 = vmatprep.subr.mxu0 0.0
        %664 = vmatpush1.msra.mxu0 0.0
        %665 = vmatprep.subr.mxu0 0.0
        %666 = vmatpush1.msra.mxu0 0.0
        %667 = vmatprep.subr.mxu0 0.0
        %668 = vmatpush1.msra.mxu0 0.0
        %669 = vmatprep.subr.mxu0 0.0
        %670 = vmatpush1.msra.mxu0 0.0
        %671 = vmatprep.subr.mxu0 0.0
        %672 = vmatpush1.msra.mxu0 0.0
        %673 = vmatprep.subr.mxu0 0.0
        %674 = vmatpush1.msra.mxu0 0.0
        %675 = vmatprep.subr.mxu0 0.0
        %676 = vmatpush1.msra.mxu0 0.0
        %677 = vmatprep.subr.mxu0 0.0
        %678 = vmatpush1.msra.mxu0 0.0
        %679 = vmatprep.subr.mxu0 0.0
        %680 = vmatpush1.msra.mxu0 0.0
        %681 = vmatprep.subr.mxu0 0.0
        %682 = vmatpush1.msra.mxu0 0.0
        %683 = vmatprep.subr.mxu0 0.0
        %684 = vmatpush1.msra.mxu0 0.0
        %685 = vmatprep.subr.mxu0 0.0
        %686 = vmatpush1.msra.mxu0 0.0
        %687 = vmatprep.mubr.f32.mxu0 0.0
        %688 = vmatmul.mubr.f32.gmra.mrb[0].mxu0 %v621
        %v689 = vpop.f32.mrb[0].mxu0
        %v690 = vadd.f32 %v416, %v689
        %v691 = vpop.f32.mrb[0].mxu0
        %692 = vdwg.mxu0
        %v693 = vxor.u32 %v690, 2147483648
        %v694 = vmul.f32 %v693, 1.442695
        %v695 = vpow.pop %v694
        %v696 = vadd.f32 %v695, 1.0
        %v697 = vrcp.pop %v696
        %v698 = vmul.f32 1.0, %v697
        %v699 = vmul.f32 %v698, %v617
        %v700 = vsub.f32 1.0, %v698
        %702 = vrot.lane.b32.xlu0 %v690, 32
        %v703 = vpop.permute.xlu0 %702
        %v705 = vmul.f32 %v700, %v703
        %v706 = vadd.f32 %v699, %v705
        %v707 = vtanh.pop %v706
        %709 = vrot.lane.b32.xlu0 %v707, 32
        %v710 = vpop.permute.xlu0 %709
        %v712 = vmul.f32 %v698, %v710
        %v713 = vmul.f32 %v700, %v616
        %v714 = vadd.f32 %v712, %v713
        %716 = vrot.lane.b32.xlu0 %v714, 64
        %v717 = vpop.permute.xlu0 %716
        %v718 = vsel %vm417, %v717, 0
        %720 = vmatprep.subr.mxu0 0.0
        %721 = vmatpush1.msra.mxu0 %v401
        %722 = vmatprep.subr.mxu0 0.0
        %723 = vmatpush1.msra.mxu0 %v402
        %724 = vmatprep.subr.mxu0 0.0
        %725 = vmatpush1.msra.mxu0 %v403
        %726 = vmatprep.subr.mxu0 0.0
        %727 = vmatpush1.msra.mxu0 %v404
        %728 = vmatprep.subr.mxu0 0.0
        %729 = vmatpush1.msra.mxu0 0.0
        %730 = vmatprep.subr.mxu0 0.0
        %731 = vmatpush1.msra.mxu0 0.0
        %732 = vmatprep.subr.mxu0 0.0
        %733 = vmatpush1.msra.mxu0 0.0
        %734 = vmatprep.subr.mxu0 0.0
        %735 = vmatpush1.msra.mxu0 0.0
        %736 = vmatprep.subr.mxu0 0.0
        %737 = vmatpush1.msra.mxu0 0.0
        %738 = vmatprep.subr.mxu0 0.0
        %739 = vmatpush1.msra.mxu0 0.0
        %740 = vmatprep.subr.mxu0 0.0
        %741 = vmatpush1.msra.mxu0 0.0
        %742 = vmatprep.subr.mxu0 0.0
        %743 = vmatpush1.msra.mxu0 0.0
        %744 = vmatprep.subr.mxu0 0.0
        %745 = vmatpush1.msra.mxu0 0.0
        %746 = vmatprep.subr.mxu0 0.0
        %747 = vmatpush1.msra.mxu0 0.0
        %748 = vmatprep.subr.mxu0 0.0
        %749 = vmatpush1.msra.mxu0 0.0
        %750 = vmatprep.subr.mxu0 0.0
        %751 = vmatpush1.msra.mxu0 0.0
        %752 = vmatprep.subr.mxu0 0.0
        %753 = vmatpush1.msra.mxu0 0.0
        %754 = vmatprep.subr.mxu0 0.0
        %755 = vmatpush1.msra.mxu0 0.0
        %756 = vmatprep.subr.mxu0 0.0
        %757 = vmatpush1.msra.mxu0 0.0
        %758 = vmatprep.subr.mxu0 0.0
        %759 = vmatpush1.msra.mxu0 0.0
        %760 = vmatprep.subr.mxu0 0.0
        %761 = vmatpush1.msra.mxu0 0.0
        %762 = vmatprep.subr.mxu0 0.0
        %763 = vmatpush1.msra.mxu0 0.0
        %764 = vmatprep.subr.mxu0 0.0
        %765 = vmatpush1.msra.mxu0 0.0
        %766 = vmatprep.subr.mxu0 0.0
        %767 = vmatpush1.msra.mxu0 0.0
        %768 = vmatprep.subr.mxu0 0.0
        %769 = vmatpush1.msra.mxu0 0.0
        %770 = vmatprep.subr.mxu0 0.0
        %771 = vmatpush1.msra.mxu0 0.0
        %772 = vmatprep.subr.mxu0 0.0
        %773 = vmatpush1.msra.mxu0 0.0
        %774 = vmatprep.subr.mxu0 0.0
        %775 = vmatpush1.msra.mxu0 0.0
        %776 = vmatprep.subr.mxu0 0.0
        %777 = vmatpush1.msra.mxu0 0.0
        %778 = vmatprep.subr.mxu0 0.0
        %779 = vmatpush1.msra.mxu0 0.0
        %780 = vmatprep.subr.mxu0 0.0
        %781 = vmatpush1.msra.mxu0 0.0
        %782 = vmatprep.subr.mxu0 0.0
        %783 = vmatpush1.msra.mxu0 0.0
        %784 = vmatprep.mubr.f32.mxu0 0.0
        %785 = vmatmul.mubr.f32.gmra.mrb[0].mxu0 %v718
        %v786 = vpop.f32.mrb[0].mxu0
        %v787 = vadd.f32 %v523, %v786
        %v788 = vpop.f32.mrb[0].mxu0
        %789 = vdwg.mxu0
        %v790 = vsel %vm409, %v787, -1e+30
        %791 = vmax.xlane.f32.xlu0 %v790
        %v792 = vpop.xlane.xlu0 %791
        %v793 = vsub.f32 %v790, %v792
        %v794 = vmul.f32 %v793, 1.442695
        %v795 = vpow.pop %v794
        %796 = vadd.xlane.f32.xlu0 %v795
        %v797 = vpop.xlane.xlu0 %796
        %v798 = vlog2.pop %v797
        %v799 = vmul.f32 %v798, 0.6931472
        %v800 = vadd.f32 %v799, %v792
        %v801 = vsub.f32 %v790, %v800
        %s802 = scalar_lea.vmem %s372, 8 [#allocation11]
        %803 = vst [vmem:[%s802] sm:$0xff] %v801
        %s804 = sadd.s32 %s410, 1
        %p805 = scmp.lt.s32.totalorder %s804, 10
        %s806 = scalar_select %p805, 1, 0
        %v807 = vstv %s806
        %vm808 = vcmp.eq.s32.totalorder %v807, 1
        %v809 = vsel %vm808, %v714, %v616
        %v810 = vsel %vm808, %v706, %v617
        %812 = vrot.lane.b32.xlu0 %v809, 64
        %v813 = vpop.permute.xlu0 %812
        %v814 = vsel %vm417, %v813, 0
        %816 = vmatprep.subr.mxu0 0.0
        %817 = vmatpush1.msra.mxu0 %v397
        %818 = vmatprep.subr.mxu0 0.0
        %819 = vmatpush1.msra.mxu0 %v398
        %820 = vmatprep.subr.mxu0 0.0
        %821 = vmatpush1.msra.mxu0 %v399
        %822 = vmatprep.subr.mxu0 0.0
        %823 = vmatpush1.msra.mxu0 %v400
        %824 = vmatprep.subr.mxu0 0.0
        %825 = vmatpush1.msra.mxu0 0.0
        %826 = vmatprep.subr.mxu0 0.0
        %827 = vmatpush1.msra.mxu0 0.0
        %828 = vmatprep.subr.mxu0 0.0
        %829 = vmatpush1.msra.mxu0 0.0
        %830 = vmatprep.subr.mxu0 0.0
        %831 = vmatpush1.msra.mxu0 0.0
        %832 = vmatprep.subr.mxu0 0.0
        %833 = vmatpush1.msra.mxu0 0.0
        %834 = vmatprep.subr.mxu0 0.0
        %835 = vmatpush1.msra.mxu0 0.0
        %836 = vmatprep.subr.mxu0 0.0
        %837 = vmatpush1.msra.mxu0 0.0
        %838 = vmatprep.subr.mxu0 0.0
        %839 = vmatpush1.msra.mxu0 0.0
        %840 = vmatprep.subr.mxu0 0.0
        %841 = vmatpush1.msra.mxu0 0.0
        %842 = vmatprep.subr.mxu0 0.0
        %843 = vmatpush1.msra.mxu0 0.0
        %844 = vmatprep.subr.mxu0 0.0
        %845 = vmatpush1.msra.mxu0 0.0
        %846 = vmatprep.subr.mxu0 0.0
        %847 = vmatpush1.msra.mxu0 0.0
        %848 = vmatprep.subr.mxu0 0.0
        %849 = vmatpush1.msra.mxu0 0.0
        %850 = vmatprep.subr.mxu0 0.0
        %851 = vmatpush1.msra.mxu0 0.0
        %852 = vmatprep.subr.mxu0 0.0
        %853 = vmatpush1.msra.mxu0 0.0
        %854 = vmatprep.subr.mxu0 0.0
        %855 = vmatpush1.msra.mxu0 0.0
        %856 = vmatprep.subr.mxu0 0.0
        %857 = vmatpush1.msra.mxu0 0.0
        %858 = vmatprep.subr.mxu0 0.0
        %859 = vmatpush1.msra.mxu0 0.0
        %860 = vmatprep.subr.mxu0 0.0
        %861 = vmatpush1.msra.mxu0 0.0
        %862 = vmatprep.subr.mxu0 0.0
        %863 = vmatpush1.msra.mxu0 0.0
        %864 = vmatprep.subr.mxu0 0.0
        %865 = vmatpush1.msra.mxu0 0.0
        %866 = vmatprep.subr.mxu0 0.0
        %867 = vmatpush1.msra.mxu0 0.0
        %868 = vmatprep.subr.mxu0 0.0
        %869 = vmatpush1.msra.mxu0 0.0
        %870 = vmatprep.subr.mxu0 0.0
        %871 = vmatpush1.msra.mxu0 0.0
        %872 = vmatprep.subr.mxu0 0.0
        %873 = vmatpush1.msra.mxu0 0.0
        %874 = vmatprep.subr.mxu0 0.0
        %875 = vmatpush1.msra.mxu0 0.0
        %876 = vmatprep.subr.mxu0 0.0
        %877 = vmatpush1.msra.mxu0 0.0
        %878 = vmatprep.subr.mxu0 0.0
        %879 = vmatpush1.msra.mxu0 0.0
        %880 = vmatprep.mubr.f32.mxu0 0.0
        %881 = vmatmul.mubr.f32.gmra.mrb[0].mxu0 %v814
        %v882 = vpop.f32.mrb[0].mxu0
        %v883 = vadd.f32 %v416, %v882
        %v884 = vpop.f32.mrb[0].mxu0
        %885 = vdwg.mxu0
        %v886 = vxor.u32 %v883, 2147483648
        %v887 = vmul.f32 %v886, 1.442695
        %v888 = vpow.pop %v887
        %v889 = vadd.f32 %v888, 1.0
        %v890 = vrcp.pop %v889
        %v891 = vmul.f32 1.0, %v890
        %v892 = vmul.f32 %v891, %v810
        %v893 = vsub.f32 1.0, %v891
        %895 = vrot.lane.b32.xlu0 %v883, 32
        %v896 = vpop.permute.xlu0 %895
        %v898 = vmul.f32 %v893, %v896
        %v899 = vadd.f32 %v892, %v898
        %v900 = vtanh.pop %v899
        %902 = vrot.lane.b32.xlu0 %v900, 32
        %v903 = vpop.permute.xlu0 %902
        %v905 = vmul.f32 %v891, %v903
        %v906 = vmul.f32 %v893, %v809
        %v907 = vadd.f32 %v905, %v906
        %909 = vrot.lane.b32.xlu0 %v907, 64
        %v910 = vpop.permute.xlu0 %909
        %v911 = vsel %vm417, %v910, 0
        %913 = vmatprep.subr.mxu0 0.0
        %914 = vmatpush1.msra.mxu0 %v401
        %915 = vmatprep.subr.mxu0 0.0
        %916 = vmatpush1.msra.mxu0 %v402
        %917 = vmatprep.subr.mxu0 0.0
        %918 = vmatpush1.msra.mxu0 %v403
        %919 = vmatprep.subr.mxu0 0.0
        %920 = vmatpush1.msra.mxu0 %v404
        %921 = vmatprep.subr.mxu0 0.0
        %922 = vmatpush1.msra.mxu0 0.0
        %923 = vmatprep.subr.mxu0 0.0
        %924 = vmatpush1.msra.mxu0 0.0
        %925 = vmatprep.subr.mxu0 0.0
        %926 = vmatpush1.msra.mxu0 0.0
        %927 = vmatprep.subr.mxu0 0.0
        %928 = vmatpush1.msra.mxu0 0.0
        %929 = vmatprep.subr.mxu0 0.0
        %930 = vmatpush1.msra.mxu0 0.0
        %931 = vmatprep.subr.mxu0 0.0
        %932 = vmatpush1.msra.mxu0 0.0
        %933 = vmatprep.subr.mxu0 0.0
        %934 = vmatpush1.msra.mxu0 0.0
        %935 = vmatprep.subr.mxu0 0.0
        %936 = vmatpush1.msra.mxu0 0.0
        %937 = vmatprep.subr.mxu0 0.0
        %938 = vmatpush1.msra.mxu0 0.0
        %939 = vmatprep.subr.mxu0 0.0
        %940 = vmatpush1.msra.mxu0 0.0
        %941 = vmatprep.subr.mxu0 0.0
        %942 = vmatpush1.msra.mxu0 0.0
        %943 = vmatprep.subr.mxu0 0.0
        %944 = vmatpush1.msra.mxu0 0.0
        %945 = vmatprep.subr.mxu0 0.0
        %946 = vmatpush1.msra.mxu0 0.0
        %947 = vmatprep.subr.mxu0 0.0
        %948 = vmatpush1.msra.mxu0 0.0
        %949 = vmatprep.subr.mxu0 0.0
        %950 = vmatpush1.msra.mxu0 0.0
        %951 = vmatprep.subr.mxu0 0.0
        %952 = vmatpush1.msra.mxu0 0.0
        %953 = vmatprep.subr.mxu0 0.0
        %954 = vmatpush1.msra.mxu0 0.0
        %955 = vmatprep.subr.mxu0 0.0
        %956 = vmatpush1.msra.mxu0 0.0
        %957 = vmatprep.subr.mxu0 0.0
        %958 = vmatpush1.msra.mxu0 0.0
        %959 = vmatprep.subr.mxu0 0.0
        %960 = vmatpush1.msra.mxu0 0.0
        %961 = vmatprep.subr.mxu0 0.0
        %962 = vmatpush1.msra.mxu0 0.0
        %963 = vmatprep.subr.mxu0 0.0
        %964 = vmatpush1.msra.mxu0 0.0
        %965 = vmatprep.subr.mxu0 0.0
        %966 = vmatpush1.msra.mxu0 0.0
        %967 = vmatprep.subr.mxu0 0.0
        %968 = vmatpush1.msra.mxu0 0.0
        %969 = vmatprep.subr.mxu0 0.0
        %970 = vmatpush1.msra.mxu0 0.0
        %971 = vmatprep.subr.mxu0 0.0
        %972 = vmatpush1.msra.mxu0 0.0
        %973 = vmatprep.subr.mxu0 0.0
        %974 = vmatpush1.msra.mxu0 0.0
        %975 = vmatprep.subr.mxu0 0.0
        %976 = vmatpush1.msra.mxu0 0.0
        %977 = vmatprep.mubr.f32.mxu0 0.0
        %978 = vmatmul.mubr.f32.gmra.mrb[0].mxu0 %v911
        %v979 = vpop.f32.mrb[0].mxu0
        %v980 = vadd.f32 %v523, %v979
        %v981 = vpop.f32.mrb[0].mxu0
        %982 = vdwg.mxu0
        %v983 = vsel %vm409, %v980, -1e+30
        %984 = vmax.xlane.f32.xlu0 %v983
        %v985 = vpop.xlane.xlu0 %984
        %v986 = vsub.f32 %v983, %v985
        %v987 = vmul.f32 %v986, 1.442695
        %v988 = vpow.pop %v987
        %989 = vadd.xlane.f32.xlu0 %v988
        %v990 = vpop.xlane.xlu0 %989
        %v991 = vlog2.pop %v990
        %v992 = vmul.f32 %v991, 0.6931472
        %v993 = vadd.f32 %v992, %v985
        %v994 = vsub.f32 %v983, %v993
        %s995 = scalar_lea.vmem %s372, 16 [#allocation11]
        %996 = vst [vmem:[%s995] sm:$0xff] %v994
        %s997 = sadd.s32 %s410, 2
        %p998 = scmp.lt.s32.totalorder %s997, 10
        %s999 = scalar_select %p998, 1, 0
        %v1000 = vstv %s999
        %vm1001 = vcmp.eq.s32.totalorder %v1000, 1
        %v1002 = vsel %vm1001, %v907, %v809
        %v1003 = vsel %vm1001, %v899, %v810
        %1005 = vrot.lane.b32.xlu0 %v1002, 64
        %v1006 = vpop.permute.xlu0 %1005
        %v1007 = vsel %vm417, %v1006, 0
        %1009 = vmatprep.subr.mxu0 0.0
        %1010 = vmatpush1.msra.mxu0 %v397
        %1011 = vmatprep.subr.mxu0 0.0
        %1012 = vmatpush1.msra.mxu0 %v398
        %1013 = vmatprep.subr.mxu0 0.0
        %1014 = vmatpush1.msra.mxu0 %v399
        %1015 = vmatprep.subr.mxu0 0.0
        %1016 = vmatpush1.msra.mxu0 %v400
        %1017 = vmatprep.subr.mxu0 0.0
        %1018 = vmatpush1.msra.mxu0 0.0
        %1019 = vmatprep.subr.mxu0 0.0
        %1020 = vmatpush1.msra.mxu0 0.0
        %1021 = vmatprep.subr.mxu0 0.0
        %1022 = vmatpush1.msra.mxu0 0.0
        %1023 = vmatprep.subr.mxu0 0.0
        %1024 = vmatpush1.msra.mxu0 0.0
        %1025 = vmatprep.subr.mxu0 0.0
        %1026 = vmatpush1.msra.mxu0 0.0
        %1027 = vmatprep.subr.mxu0 0.0
        %1028 = vmatpush1.msra.mxu0 0.0
        %1029 = vmatprep.subr.mxu0 0.0
        %1030 = vmatpush1.msra.mxu0 0.0
        %1031 = vmatprep.subr.mxu0 0.0
        %1032 = vmatpush1.msra.mxu0 0.0
        %1033 = vmatprep.subr.mxu0 0.0
        %1034 = vmatpush1.msra.mxu0 0.0
        %1035 = vmatprep.subr.mxu0 0.0
        %1036 = vmatpush1.msra.mxu0 0.0
        %1037 = vmatprep.subr.mxu0 0.0
        %1038 = vmatpush1.msra.mxu0 0.0
        %1039 = vmatprep.subr.mxu0 0.0
        %1040 = vmatpush1.msra.mxu0 0.0
        %1041 = vmatprep.subr.mxu0 0.0
        %1042 = vmatpush1.msra.mxu0 0.0
        %1043 = vmatprep.subr.mxu0 0.0
        %1044 = vmatpush1.msra.mxu0 0.0
        %1045 = vmatprep.subr.mxu0 0.0
        %1046 = vmatpush1.msra.mxu0 0.0
        %1047 = vmatprep.subr.mxu0 0.0
        %1048 = vmatpush1.msra.mxu0 0.0
        %1049 = vmatprep.subr.mxu0 0.0
        %1050 = vmatpush1.msra.mxu0 0.0
        %1051 = vmatprep.subr.mxu0 0.0
        %1052 = vmatpush1.msra.mxu0 0.0
        %1053 = vmatprep.subr.mxu0 0.0
        %1054 = vmatpush1.msra.mxu0 0.0
        %1055 = vmatprep.subr.mxu0 0.0
        %1056 = vmatpush1.msra.mxu0 0.0
        %1057 = vmatprep.subr.mxu0 0.0
        %1058 = vmatpush1.msra.mxu0 0.0
        %1059 = vmatprep.subr.mxu0 0.0
        %1060 = vmatpush1.msra.mxu0 0.0
        %1061 = vmatprep.subr.mxu0 0.0
        %1062 = vmatpush1.msra.mxu0 0.0
        %1063 = vmatprep.subr.mxu0 0.0
        %1064 = vmatpush1.msra.mxu0 0.0
        %1065 = vmatprep.subr.mxu0 0.0
        %1066 = vmatpush1.msra.mxu0 0.0
        %1067 = vmatprep.subr.mxu0 0.0
        %1068 = vmatpush1.msra.mxu0 0.0
        %1069 = vmatprep.subr.mxu0 0.0
        %1070 = vmatpush1.msra.mxu0 0.0
        %1071 = vmatprep.subr.mxu0 0.0
        %1072 = vmatpush1.msra.mxu0 0.0
        %1073 = vmatprep.mubr.f32.mxu0 0.0
        %1074 = vmatmul.mubr.f32.gmra.mrb[0].mxu0 %v1007
        %v1075 = vpop.f32.mrb[0].mxu0
        %v1076 = vadd.f32 %v416, %v1075
        %v1077 = vpop.f32.mrb[0].mxu0
        %1078 = vdwg.mxu0
        %v1079 = vxor.u32 %v1076, 2147483648
        %v1080 = vmul.f32 %v1079, 1.442695
        %v1081 = vpow.pop %v1080
        %v1082 = vadd.f32 %v1081, 1.0
        %v1083 = vrcp.pop %v1082
        %v1084 = vmul.f32 1.0, %v1083
        %v1085 = vmul.f32 %v1084, %v1003
        %v1086 = vsub.f32 1.0, %v1084
        %1088 = vrot.lane.b32.xlu0 %v1076, 32
        %v1089 = vpop.permute.xlu0 %1088
        %v1091 = vmul.f32 %v1086, %v1089
        %v1092 = vadd.f32 %v1085, %v1091
        %v1093 = vtanh.pop %v1092
        %1095 = vrot.lane.b32.xlu0 %v1093, 32
        %v1096 = vpop.permute.xlu0 %1095
        %v1098 = vmul.f32 %v1084, %v1096
        %v1099 = vmul.f32 %v1086, %v1002
        %v1100 = vadd.f32 %v1098, %v1099
        %1102 = vrot.lane.b32.xlu0 %v1100, 64
        %v1103 = vpop.permute.xlu0 %1102
        %v1104 = vsel %vm417, %v1103, 0
        %1106 = vmatprep.subr.mxu0 0.0
        %1107 = vmatpush1.msra.mxu0 %v401
        %1108 = vmatprep.subr.mxu0 0.0
        %1109 = vmatpush1.msra.mxu0 %v402
        %1110 = vmatprep.subr.mxu0 0.0
        %1111 = vmatpush1.msra.mxu0 %v403
        %1112 = vmatprep.subr.mxu0 0.0
        %1113 = vmatpush1.msra.mxu0 %v404
        %1114 = vmatprep.subr.mxu0 0.0
        %1115 = vmatpush1.msra.mxu0 0.0
        %1116 = vmatprep.subr.mxu0 0.0
        %1117 = vmatpush1.msra.mxu0 0.0
        %1118 = vmatprep.subr.mxu0 0.0
        %1119 = vmatpush1.msra.mxu0 0.0
        %1120 = vmatprep.subr.mxu0 0.0
        %1121 = vmatpush1.msra.mxu0 0.0
        %1122 = vmatprep.subr.mxu0 0.0
        %1123 = vmatpush1.msra.mxu0 0.0
        %1124 = vmatprep.subr.mxu0 0.0
        %1125 = vmatpush1.msra.mxu0 0.0
        %1126 = vmatprep.subr.mxu0 0.0
        %1127 = vmatpush1.msra.mxu0 0.0
        %1128 = vmatprep.subr.mxu0 0.0
        %1129 = vmatpush1.msra.mxu0 0.0
        %1130 = vmatprep.subr.mxu0 0.0
        %1131 = vmatpush1.msra.mxu0 0.0
        %1132 = vmatprep.subr.mxu0 0.0
        %1133 = vmatpush1.msra.mxu0 0.0
        %1134 = vmatprep.subr.mxu0 0.0
        %1135 = vmatpush1.msra.mxu0 0.0
        %1136 = vmatprep.subr.mxu0 0.0
        %1137 = vmatpush1.msra.mxu0 0.0
        %1138 = vmatprep.subr.mxu0 0.0
        %1139 = vmatpush1.msra.mxu0 0.0
        %1140 = vmatprep.subr.mxu0 0.0
        %1141 = vmatpush1.msra.mxu0 0.0
        %1142 = vmatprep.subr.mxu0 0.0
        %1143 = vmatpush1.msra.mxu0 0.0
        %1144 = vmatprep.subr.mxu0 0.0
        %1145 = vmatpush1.msra.mxu0 0.0
        %1146 = vmatprep.subr.mxu0 0.0
        %1147 = vmatpush1.msra.mxu0 0.0
        %1148 = vmatprep.subr.mxu0 0.0
        %1149 = vmatpush1.msra.mxu0 0.0
        %1150 = vmatprep.subr.mxu0 0.0
        %1151 = vmatpush1.msra.mxu0 0.0
        %1152 = vmatprep.subr.mxu0 0.0
        %1153 = vmatpush1.msra.mxu0 0.0
        %1154 = vmatprep.subr.mxu0 0.0
        %1155 = vmatpush1.msra.mxu0 0.0
        %1156 = vmatprep.subr.mxu0 0.0
        %1157 = vmatpush1.msra.mxu0 0.0
        %1158 = vmatprep.subr.mxu0 0.0
        %1159 = vmatpush1.msra.mxu0 0.0
        %1160 = vmatprep.subr.mxu0 0.0
        %1161 = vmatpush1.msra.mxu0 0.0
        %1162 = vmatprep.subr.mxu0 0.0
        %1163 = vmatpush1.msra.mxu0 0.0
        %1164 = vmatprep.subr.mxu0 0.0
        %1165 = vmatpush1.msra.mxu0 0.0
        %1166 = vmatprep.subr.mxu0 0.0
        %1167 = vmatpush1.msra.mxu0 0.0
        %1168 = vmatprep.subr.mxu0 0.0
        %1169 = vmatpush1.msra.mxu0 0.0
        %1170 = vmatprep.mubr.f32.mxu0 0.0
        %1171 = vmatmul.mubr.f32.gmra.mrb[0].mxu0 %v1104
        %v1172 = vpop.f32.mrb[0].mxu0
        %v1173 = vadd.f32 %v523, %v1172
        %v1174 = vpop.f32.mrb[0].mxu0
        %1175 = vdwg.mxu0
        %v1176 = vsel %vm409, %v1173, -1e+30
        %1177 = vmax.xlane.f32.xlu0 %v1176
        %v1178 = vpop.xlane.xlu0 %1177
        %v1179 = vsub.f32 %v1176, %v1178
        %v1180 = vmul.f32 %v1179, 1.442695
        %v1181 = vpow.pop %v1180
        %1182 = vadd.xlane.f32.xlu0 %v1181
        %v1183 = vpop.xlane.xlu0 %1182
        %v1184 = vlog2.pop %v1183
        %v1185 = vmul.f32 %v1184, 0.6931472
        %v1186 = vadd.f32 %v1185, %v1178
        %v1187 = vsub.f32 %v1176, %v1186
        %s1188 = scalar_lea.vmem %s372, 24 [#allocation11]
        %1189 = vst [vmem:[%s1188] sm:$0xff] %v1187
        %s1190 = sadd.s32 %s410, 3
        %p1191 = scmp.lt.s32.totalorder %s1190, 10
        %s1192 = scalar_select %p1191, 1, 0
        %v1193 = vstv %s1192
        %vm1194 = vcmp.eq.s32.totalorder %v1193, 1
        %v1195 = vsel %vm1194, %v1100, %v1002
        %v1196 = vsel %vm1194, %v1092, %v1003
        %1198 = vrot.lane.b32.xlu0 %v1195, 64
        %v1199 = vpop.permute.xlu0 %1198
        %1201 = vst.msk [vmem:[#allocation2] sm:$0xff] %vm417, %v1199
        %1203 = vrot.lane.b32.xlu0 %v1196, 96
        %v1204 = vpop.permute.xlu0 %1203
        %1206 = vst.msk [vmem:[#allocation3] sm:$0xff] %vm417, %v1204
        %p1207 = scmp.eq.s32.totalorder %s32, 2
        // Predicated region
        $region61: #{tpu_custom_call.1} parent=39 // pred_check
          %p1208 = pneg %p1207
        $region62: #{tpu_custom_call.1} parent=39 // pred_check_branch
          %1210 = sbr.rel (%p1208) target = $region64
        $region63: #{tpu_custom_call.1} parent=39 // pred_region
          %1211 = vst.msk [vmem:[%s379] sm:$0xff] %vm417, %v1199
          %1212 = vst.msk [vmem:[%s386] sm:$0xff] %vm417, %v1204
        $region64: #{tpu_custom_call.1} parent=39 // pred_fallthru
          _
        %s1213 = sand.u32 %s164, 1
        %s1214 = scalar_lea.sflag [#allocation6], %s1213
        %s1215 = sand.u32 %s164, 1
        %s1216 = smul.addr %s1215, 32
        %s1217 = scalar_lea.vmem [#allocation11], %s1216
        %s1218 = sand.u32 %s27, 1
        %s1219 = scalar_lea.sflag [#allocation13], %s1218
        %s1220 = sand.u32 %s190, 1
        %s1221 = smul.addr %s1220, 8
        %s1222 = scalar_lea.vmem [#allocation12], %s1221
        %s1223 = sand.u32 %s27, 1
        %s1224 = scalar_lea.sflag [#allocation13], %s1223
        %s1225 = sand.u32 %s216, 1
        %s1226 = smul.addr %s1225, 8
        %s1227 = scalar_lea.vmem [#allocation14], %s1226
        // Predicated region
        $region65: #{tpu_custom_call.1} parent=39 // pred_check
          %p1228 = pneg %p174
        $region66: #{tpu_custom_call.1} parent=39 // pred_check_branch
          %1230 = sbr.rel (%p1228) target = $region68
        $region67: #{tpu_custom_call.1} parent=39 // pred_region
          %s1231 = smul.u32 4, %s32
          %s1233 = ssub.s32 512, 512
          %1234 = vsyncadd %s1214, %s1233
          %s1235 = smul.addr %s1231, 2
          %s1236 = sadd.s32 %s31, %s1235
          %s1237 = smul.addr %s1236, 128
          %s1238 = scalar_lea.hbm %s5, %s1237
          %s1239 = sshll.u32 %s1217, 4
          %s1240 = int_to_ptr.vmem [resolvable:$true] %s1239
          %1245 = dma.vmem_to_hbm [thread:$0]  %s1240, 512, %s1238, %s1214, 128, 256, 8
        $region68: #{tpu_custom_call.1} parent=39 // pred_fallthru
          _
        // Predicated region
        $region69: #{tpu_custom_call.1} parent=39 // pred_check
          %p1246 = pneg %p200
        $region70: #{tpu_custom_call.1} parent=39 // pred_check_branch
          %1248 = sbr.rel (%p1246) target = $region72
        $region71: #{tpu_custom_call.1} parent=39 // pred_region
          %s1250 = ssub.s32 128, 128
          %1251 = vsyncadd %s1219, %s1250
          %s1252 = smul.addr %s31, 128
          %s1253 = scalar_lea.hbm %s6, %s1252
          %s1255 = sshll.u32 %s1222, 4
          %s1256 = int_to_ptr.vmem [resolvable:$true] %s1255
          %1258 = dma.vmem_to_hbm [thread:$0]  %s1256, 128, %s1253, %s1219
        $region72: #{tpu_custom_call.1} parent=39 // pred_fallthru
          _
        // Predicated region
        $region73: #{tpu_custom_call.1} parent=39 // pred_check
          %p1259 = pneg %p226
        $region74: #{tpu_custom_call.1} parent=39 // pred_check_branch
          %1261 = sbr.rel (%p1259) target = $region76
        $region75: #{tpu_custom_call.1} parent=39 // pred_region
          %s1263 = ssub.s32 128, 128
          %1264 = vsyncadd %s1224, %s1263
          %s1265 = smul.addr %s31, 128
          %s1266 = scalar_lea.hbm %s7, %s1265
          %s1268 = sshll.u32 %s1227, 4
          %s1269 = int_to_ptr.vmem [resolvable:$true] %s1268
          %1271 = dma.vmem_to_hbm [thread:$0]  %s1269, 128, %s1266, %s1224
        $region76: #{tpu_custom_call.1} parent=39 // pred_fallthru
          _
      $region40: #{tpu_custom_call.1} parent=5 // pred_fallthru
        _
      %p1272 = scmp.le.s32.totalorder 2, %s22
      // Predicated region
      $region77: #{tpu_custom_call.1} parent=5 // pred_check
        %p1273 = pneg %p1272
      $region78: #{tpu_custom_call.1} parent=5 // pred_check_branch
        %1275 = sbr.rel (%p1273) target = $region80
      $region79: #{tpu_custom_call.1} parent=5 // pred_region
        %s1276 = ssub.s32 %s22, 2
        // Predicated region
        $region81: #{tpu_custom_call.1} parent=79 // pred_check
          %p1277 = pneg %p180
        $region82: #{tpu_custom_call.1} parent=79 // pred_check_branch
          %1279 = sbr.rel (%p1277) target = $region84
        $region83: #{tpu_custom_call.1} parent=79 // pred_region
          %s1280 = sand.u32 %s165, 1
          %s1281 = scalar_lea.sflag [#allocation6], %s1280
          %s1282 = sand.u32 %s165, 1
          %s1283 = smul.addr %s1282, 32
          %s1284 = scalar_lea.vmem [#allocation11], %s1283
          %1285 = dma.done %s1281, 512
        $region84: #{tpu_custom_call.1} parent=79 // pred_fallthru
          _
        // Predicated region
        $region85: #{tpu_custom_call.1} parent=79 // pred_check
          %p1286 = pneg %p206
        $region86: #{tpu_custom_call.1} parent=79 // pred_check_branch
          %1288 = sbr.rel (%p1286) target = $region88
        $region87: #{tpu_custom_call.1} parent=79 // pred_region
          %s1289 = sand.u32 %s28, 1
          %s1290 = scalar_lea.sflag [#allocation13], %s1289
          %s1291 = sand.u32 %s191, 1
          %s1292 = smul.addr %s1291, 8
          %s1293 = scalar_lea.vmem [#allocation12], %s1292
          %1294 = dma.done %s1290, 128
        $region88: #{tpu_custom_call.1} parent=79 // pred_fallthru
          _
        // Predicated region
        $region89: #{tpu_custom_call.1} parent=79 // pred_check
          %p1295 = pneg %p232
        $region90: #{tpu_custom_call.1} parent=79 // pred_check_branch
          %1297 = sbr.rel (%p1295) target = $region92
        $region91: #{tpu_custom_call.1} parent=79 // pred_region
          %s1298 = sand.u32 %s28, 1
          %s1299 = scalar_lea.sflag [#allocation13], %s1298
          %s1300 = sand.u32 %s217, 1
          %s1301 = smul.addr %s1300, 8
          %s1302 = scalar_lea.vmem [#allocation14], %s1301
          %1303 = dma.done %s1299, 128
        $region92: #{tpu_custom_call.1} parent=79 // pred_fallthru
          _
      $region80: #{tpu_custom_call.1} parent=5 // pred_fallthru
        _
    $region6: #{tpu_custom_call.1} parent=1 // loop_footer
      %s26 = sadd.s32 1, %s22
    $region7: #{tpu_custom_call.1} parent=1 // loop_footer_branch
      %21 = sbr.rel target = $region3
    $region8: #{tpu_custom_call.1} parent=1 // loop_exit
      _
    %1304 = vsyncpa [#allocation5], 1
    %s1305 = scalar_lea.sflag [#allocation5], 1
    %1306 = vsyncpa %s1305, 1
    %1307 = vsyncpa [#allocation8], 1
    %1308 = vsyncpa [#allocation6], 1
    %s1309 = scalar_lea.sflag [#allocation6], 1
    %1310 = vsyncpa %s1309, 1
    %1311 = vsyncpa [#allocation13], 1
    %s1312 = scalar_lea.sflag [#allocation13], 1
    %1313 = vsyncpa %s1312, 1

</llo_original>
